<compile_context>
chip_gen: v6e
topology: v6e:2x2x1
jax: 0.10.0
libtpu: 0.0.40
codegen_flags: <defaults>
</compile_context>

<pallas_src>
import jax
import jax.numpy as jnp
from jax import lax
from jax.experimental import pallas as pl
from jax.experimental.pallas import tpu as pltpu

# ------------------------- small synthetic BERT config ----------------------
VOCAB = 128
TYPE_VOCAB = 2
MAX_POS = 16
HIDDEN = 32
N_HEADS = 2
HEAD_DIM = HIDDEN // N_HEADS
INTER = 64
N_LAYERS = 2
LN_EPS = 1e-12

BATCH = 2
SEQ = 8


# ------------------------------ in-kernel math ------------------------------
def _layernorm(x, gamma, beta):
    mean = jnp.mean(x, axis=-1, keepdims=True)
    var = jnp.mean((x - mean) ** 2, axis=-1, keepdims=True)
    return (x - mean) * lax.rsqrt(var + LN_EPS) * gamma + beta


def _gelu(x):
    # TODO(synk): HF BERT uses the exact erf GELU; tanh approximation is used
    # here since erf has no guaranteed Mosaic lowering.
    c = 0.7978845608028654  # sqrt(2/pi)
    return 0.5 * x * (1.0 + jnp.tanh(c * (x + 0.044715 * x * x * x)))


# --------------------------- fused forward kernel ----------------------------
def bert_kernel(we_ref, pe_ref, te_ref, bias_ref,
                emb_g_ref, emb_b_ref,
                wqkv_ref, bqkv_ref, wo_ref, bo_ref, g1_ref, b1_ref,
                w1_ref, bi1_ref, w2_ref, bi2_ref, g2_ref, b2_ref,
                out_ref):
    # One grid step == one batch element.  (S,H) activations stay resident in
    # vregs/VMEM across all layers; attention is per-example so no cross-batch
    # masking is needed.
    x = _layernorm(we_ref[0] + pe_ref[0] + te_ref[0],
                   emb_g_ref[...], emb_b_ref[...])              # (S, H) f32
    bias = bias_ref[0]                                          # (1, S) key mask bias
    scale = jnp.float32(1.0 / (HEAD_DIM ** 0.5))

    for li in range(N_LAYERS):      # static layer loop over stacked weights
        # Fused QKV projection: bf16 operands on the MXU, f32 accumulation.
        qkv = jnp.dot(x.astype(jnp.bfloat16), wqkv_ref[li],
                      preferred_element_type=jnp.float32) + bqkv_ref[li]   # (S, 3H)

        # Per-head attention.  Head contexts stay as values and are
        # concatenated once along the lane axis (no VMEM scratch round trip).
        # TODO(synk): at real head counts/dims (12 x 64) switch to one batched
        # dot_general over a lane-aligned (nH, S, hd) layout.
        ctx_heads = []
        for h in range(N_HEADS):
            lo = h * HEAD_DIM
            qh = qkv[:, lo:lo + HEAD_DIM] * scale               # scale folded into q
            kh = qkv[:, HIDDEN + lo:HIDDEN + lo + HEAD_DIM]
            vh = qkv[:, 2 * HIDDEN + lo:2 * HIDDEN + lo + HEAD_DIM]
            # Contract last dims: K consumed untransposed (no explicit .T).
            s = lax.dot_general(qh.astype(jnp.bfloat16), kh.astype(jnp.bfloat16),
                                (((1,), (1,)), ((), ())),
                                preferred_element_type=jnp.float32)        # (S, S)
            s = s + bias                                        # -10000 on padded keys
            s = s - jnp.max(s, axis=-1, keepdims=True)
            p = jnp.exp(s)
            p = p / jnp.sum(p, axis=-1, keepdims=True)          # exact divide (parity)
            ctx_heads.append(jnp.dot(p.astype(jnp.bfloat16), vh.astype(jnp.bfloat16),
                                     preferred_element_type=jnp.float32))  # (S, hd)
        ctx = jnp.concatenate(ctx_heads, axis=-1)               # (S, H) f32

        attn = jnp.dot(ctx.astype(jnp.bfloat16), wo_ref[li],
                       preferred_element_type=jnp.float32) + bo_ref[li]
        x1 = _layernorm(x + attn, g1_ref[li], b1_ref[li])

        h1 = _gelu(jnp.dot(x1.astype(jnp.bfloat16), w1_ref[li],
                           preferred_element_type=jnp.float32) + bi1_ref[li])
        h2 = jnp.dot(h1.astype(jnp.bfloat16), w2_ref[li],
                     preferred_element_type=jnp.float32) + bi2_ref[li]
        x = _layernorm(x1 + h2, g2_ref[li], b2_ref[li])

    out_ref[0] = x


def bert_forward_pallas(we, pe, te, att_bias, params):
    B, S, H = we.shape
    st = params["stacked"]

    act_spec = pl.BlockSpec((1, S, H), lambda b: (b, 0, 0))
    bias_spec = pl.BlockSpec((1, 1, S), lambda b: (b, 0, 0))

    def rep(arr):
        # Whole (small) weight array; same block index every step so it is
        # staged once and not re-fetched per batch element.
        return pl.BlockSpec(arr.shape, lambda b, _n=arr.ndim: (0,) * _n)

    weights = [params["emb_ln_g"], params["emb_ln_b"],
               st["wqkv"], st["bqkv"], st["wo"], st["bo"], st["g1"], st["b1"],
               st["w1"], st["bi1"], st["w2"], st["bi2"], st["g2"], st["b2"]]

    return pl.pallas_call(
        bert_kernel,
        out_shape=jax.ShapeDtypeStruct((B, S, H), jnp.float32),
        grid=(B,),
        in_specs=[act_spec, act_spec, act_spec, bias_spec] + [rep(w) for w in weights],
        out_specs=pl.BlockSpec((1, S, H), lambda b: (b, 0, 0)),
        compiler_params=pltpu.CompilerParams(
            dimension_semantics=("parallel",)),      # batch -> megacore on v7x
    )(we, pe, te, att_bias, *weights)


# ------------------------------ parameter init -------------------------------
def init_params(key):
    def nrm(k, shape, dtype=jnp.bfloat16, scale=0.02):
        return (scale * jax.random.normal(k, shape)).astype(dtype)

    keys = jax.random.split(key, 3 + N_LAYERS)
    params = {
        "word_emb": nrm(keys[0], (VOCAB, HIDDEN), jnp.float32),
        "pos_emb": nrm(keys[1], (MAX_POS, HIDDEN), jnp.float32),
        "type_emb": nrm(keys[2], (TYPE_VOCAB, HIDDEN), jnp.float32),
        "emb_ln_g": jnp.ones((1, HIDDEN), jnp.float32),
        "emb_ln_b": jnp.zeros((1, HIDDEN), jnp.float32),
    }
    wqkv, wo, w1, w2 = [], [], [], []
    for li in range(N_LAYERS):
        lk = jax.random.split(keys[3 + li], 6)
        wq = nrm(lk[0], (HIDDEN, HIDDEN))
        wk = nrm(lk[1], (HIDDEN, HIDDEN))
        wv = nrm(lk[2], (HIDDEN, HIDDEN))
        wqkv.append(jnp.concatenate([wq, wk, wv], axis=1))   # fused (H, 3H) bf16
        wo.append(nrm(lk[3], (HIDDEN, HIDDEN)))
        w1.append(nrm(lk[4], (HIDDEN, INTER)))
        w2.append(nrm(lk[5], (INTER, HIDDEN)))
    L = N_LAYERS
    params["stacked"] = {
        "wqkv": jnp.stack(wqkv),                             # (L, H, 3H) bf16
        "bqkv": jnp.zeros((L, 1, 3 * HIDDEN), jnp.float32),
        "wo": jnp.stack(wo),                                 # (L, H, H) bf16
        "bo": jnp.zeros((L, 1, HIDDEN), jnp.float32),
        "g1": jnp.ones((L, 1, HIDDEN), jnp.float32),
        "b1": jnp.zeros((L, 1, HIDDEN), jnp.float32),
        "w1": jnp.stack(w1),                                 # (L, H, I) bf16
        "bi1": jnp.zeros((L, 1, INTER), jnp.float32),
        "w2": jnp.stack(w2),                                 # (L, I, H) bf16
        "bi2": jnp.zeros((L, 1, HIDDEN), jnp.float32),
        "g2": jnp.ones((L, 1, HIDDEN), jnp.float32),
        "b2": jnp.zeros((L, 1, HIDDEN), jnp.float32),
    }
    return params


# ------------------------------- forward pass --------------------------------
@jax.jit
def bert_text_encoder_forward(text, params):
    """text: (B, 3, S) — [input_ids, attention_mask, token_type_ids]."""
    input_ids = text[:, 0, :].astype(jnp.int32)
    input_mask = text[:, 1, :].astype(jnp.float32)
    segment_ids = text[:, 2, :].astype(jnp.int32)
    B, S = input_ids.shape

    # Glue: embedding-table gathers stay in plain JAX.
    we = jnp.take(params["word_emb"], input_ids, axis=0)            # (B, S, H)
    te = jnp.take(params["type_emb"], segment_ids, axis=0)          # (B, S, H)
    pe = jnp.broadcast_to(params["pos_emb"][:S][None], (B, S, HIDDEN))

    # Additive key mask (B,1,S): 0 for valid keys, -10000 for padded keys —
    # HF BERT's extended_attention_mask.  O(B*S), not O((B*S)^2).
    att_bias = ((1.0 - input_mask) * -10000.0).reshape(B, 1, S).astype(jnp.float32)

    out = bert_forward_pallas(we, pe, te, att_bias, params)         # (B, S, H)
    return out  # last_hidden_states


# ----------------------------------- main -------------------------------------
if __name__ == "__main__":
    key = jax.random.PRNGKey(0)
    pkey, ikey = jax.random.split(key)
    params = init_params(pkey)

    # Build text tensor (B, 3, S) mirroring the PyTorch module's input format.
    input_ids = jax.random.randint(ikey, (BATCH, SEQ), 0, VOCAB).astype(jnp.float32)
    input_mask = jnp.ones((BATCH, SEQ), jnp.float32)
    input_mask = input_mask.at[1, SEQ - 2:].set(0.0)     # pad last 2 tokens of ex. 1
    segment_ids = jnp.concatenate(
        [jnp.zeros((BATCH, SEQ // 2)), jnp.ones((BATCH, SEQ // 2))], axis=1
    ).astype(jnp.float32)
    text = jnp.stack([input_ids, input_mask, segment_ids], axis=1)  # (B, 3, S)

    out = bert_text_encoder_forward(text, params)
    jax.block_until_ready(out)
    assert out.shape == (BATCH, SEQ, HIDDEN)
    assert jnp.all(jnp.isfinite(out))
    print("KERNEL_OK")
</pallas_src>

<mosaic_0001>
module attributes {stable_mosaic.version = 11 : i64} {
  func.func @bert_kernel(%arg0: i32, %arg1: memref<1x8x32xf32, #tpu.memory_space<vmem>>, %arg2: memref<1x8x32xf32, #tpu.memory_space<vmem>>, %arg3: memref<1x8x32xf32, #tpu.memory_space<vmem>>, %arg4: memref<1x1x8xf32, #tpu.memory_space<vmem>>, %arg5: memref<1x32xf32, #tpu.memory_space<vmem>>, %arg6: memref<1x32xf32, #tpu.memory_space<vmem>>, %arg7: memref<2x32x96xbf16, #tpu.memory_space<vmem>>, %arg8: memref<2x1x96xf32, #tpu.memory_space<vmem>>, %arg9: memref<2x32x32xbf16, #tpu.memory_space<vmem>>, %arg10: memref<2x1x32xf32, #tpu.memory_space<vmem>>, %arg11: memref<2x1x32xf32, #tpu.memory_space<vmem>>, %arg12: memref<2x1x32xf32, #tpu.memory_space<vmem>>, %arg13: memref<2x32x64xbf16, #tpu.memory_space<vmem>>, %arg14: memref<2x1x64xf32, #tpu.memory_space<vmem>>, %arg15: memref<2x64x32xbf16, #tpu.memory_space<vmem>>, %arg16: memref<2x1x32xf32, #tpu.memory_space<vmem>>, %arg17: memref<2x1x32xf32, #tpu.memory_space<vmem>>, %arg18: memref<2x1x32xf32, #tpu.memory_space<vmem>>, %arg19: memref<1x8x32xf32, #tpu.memory_space<vmem>>) attributes {dimension_semantics = [#tpu.dimension_semantics<parallel>], iteration_bounds = array<i64: 2>, scalar_prefetch = 0 : i64, scratch_operands = 0 : i64, tpu.core_type = #tpu.core_type<tc>, window_params = [{transform_indices = @transform_0, window_bounds = array<i64: 1, 8, 32>}, {transform_indices = @transform_1, window_bounds = array<i64: 1, 8, 32>}, {transform_indices = @transform_2, window_bounds = array<i64: 1, 8, 32>}, {transform_indices = @transform_3, window_bounds = array<i64: 1, 1, 8>}, {pipeline_mode = #tpu.pipeline_mode<synchronous>, transform_indices = @transform_4, window_bounds = array<i64: 1, 32>}, {pipeline_mode = #tpu.pipeline_mode<synchronous>, transform_indices = @transform_5, window_bounds = array<i64: 1, 32>}, {pipeline_mode = #tpu.pipeline_mode<synchronous>, transform_indices = @transform_6, window_bounds = array<i64: 2, 32, 96>}, {pipeline_mode = #tpu.pipeline_mode<synchronous>, transform_indices = @transform_7, window_bounds = array<i64: 2, 1, 96>}, {pipeline_mode = #tpu.pipeline_mode<synchronous>, transform_indices = @transform_8, window_bounds = array<i64: 2, 32, 32>}, {pipeline_mode = #tpu.pipeline_mode<synchronous>, transform_indices = @transform_9, window_bounds = array<i64: 2, 1, 32>}, {pipeline_mode = #tpu.pipeline_mode<synchronous>, transform_indices = @transform_10, window_bounds = array<i64: 2, 1, 32>}, {pipeline_mode = #tpu.pipeline_mode<synchronous>, transform_indices = @transform_11, window_bounds = array<i64: 2, 1, 32>}, {pipeline_mode = #tpu.pipeline_mode<synchronous>, transform_indices = @transform_12, window_bounds = array<i64: 2, 32, 64>}, {pipeline_mode = #tpu.pipeline_mode<synchronous>, transform_indices = @transform_13, window_bounds = array<i64: 2, 1, 64>}, {pipeline_mode = #tpu.pipeline_mode<synchronous>, transform_indices = @transform_14, window_bounds = array<i64: 2, 64, 32>}, {pipeline_mode = #tpu.pipeline_mode<synchronous>, transform_indices = @transform_15, window_bounds = array<i64: 2, 1, 32>}, {pipeline_mode = #tpu.pipeline_mode<synchronous>, transform_indices = @transform_16, window_bounds = array<i64: 2, 1, 32>}, {pipeline_mode = #tpu.pipeline_mode<synchronous>, transform_indices = @transform_17, window_bounds = array<i64: 2, 1, 32>}, {transform_indices = @transform_18, window_bounds = array<i64: 1, 8, 32>}]} {
    %c0 = arith.constant 0 : index
    %c0_0 = arith.constant 0 : index
    %c0_1 = arith.constant 0 : index
    %0 = vector.load %arg1[%c0, %c0_0, %c0_1] : memref<1x8x32xf32, #tpu.memory_space<vmem>>, vector<1x8x32xf32>
    %1 = vector.shape_cast %0 : vector<1x8x32xf32> to vector<8x32xf32>
    %c0_2 = arith.constant 0 : index
    %c0_3 = arith.constant 0 : index
    %c0_4 = arith.constant 0 : index
    %2 = vector.load %arg2[%c0_2, %c0_3, %c0_4] : memref<1x8x32xf32, #tpu.memory_space<vmem>>, vector<1x8x32xf32>
    %3 = vector.shape_cast %2 : vector<1x8x32xf32> to vector<8x32xf32>
    %4 = arith.addf %1, %3 : vector<8x32xf32>
    %c0_5 = arith.constant 0 : index
    %c0_6 = arith.constant 0 : index
    %c0_7 = arith.constant 0 : index
    %5 = vector.load %arg3[%c0_5, %c0_6, %c0_7] : memref<1x8x32xf32, #tpu.memory_space<vmem>>, vector<1x8x32xf32>
    %6 = vector.shape_cast %5 : vector<1x8x32xf32> to vector<8x32xf32>
    %7 = arith.addf %4, %6 : vector<8x32xf32>
    %c0_8 = arith.constant 0 : index
    %c0_9 = arith.constant 0 : index
    %8 = vector.load %arg5[%c0_8, %c0_9] : memref<1x32xf32, #tpu.memory_space<vmem>>, vector<1x32xf32>
    %c0_10 = arith.constant 0 : index
    %c0_11 = arith.constant 0 : index
    %9 = vector.load %arg6[%c0_10, %c0_11] : memref<1x32xf32, #tpu.memory_space<vmem>>, vector<1x32xf32>
    %cst = arith.constant dense<0.000000e+00> : vector<8xf32>
    %10 = vector.multi_reduction <add>, %7, %cst [1] : vector<8x32xf32> to vector<8xf32>
    %11 = vector.shape_cast %10 : vector<8xf32> to vector<8x1xf32>
    %cst_12 = arith.constant 3.200000e+01 : f32
    %12 = vector.broadcast %cst_12 : f32 to vector<8x1xf32>
    %13 = arith.divf %11, %12 : vector<8x1xf32>
    %14 = vector.broadcast %13 : vector<8x1xf32> to vector<8x32xf32>
    %15 = arith.subf %7, %14 : vector<8x32xf32>
    %16 = arith.mulf %15, %15 : vector<8x32xf32>
    %cst_13 = arith.constant dense<0.000000e+00> : vector<8xf32>
    %17 = vector.multi_reduction <add>, %16, %cst_13 [1] : vector<8x32xf32> to vector<8xf32>
    %18 = vector.shape_cast %17 : vector<8xf32> to vector<8x1xf32>
    %cst_14 = arith.constant 3.200000e+01 : f32
    %19 = vector.broadcast %cst_14 : f32 to vector<8x1xf32>
    %20 = arith.divf %18, %19 : vector<8x1xf32>
    %21 = vector.broadcast %13 : vector<8x1xf32> to vector<8x32xf32>
    %22 = arith.subf %7, %21 : vector<8x32xf32>
    %cst_15 = arith.constant 9.99999996E-13 : f32
    %23 = vector.broadcast %cst_15 : f32 to vector<8x1xf32>
    %24 = arith.addf %20, %23 : vector<8x1xf32>
    %25 = math.rsqrt %24 : vector<8x1xf32>
    %26 = vector.broadcast %25 : vector<8x1xf32> to vector<8x32xf32>
    %27 = arith.mulf %22, %26 : vector<8x32xf32>
    %28 = vector.broadcast %8 : vector<1x32xf32> to vector<8x32xf32>
    %29 = arith.mulf %27, %28 : vector<8x32xf32>
    %30 = vector.broadcast %9 : vector<1x32xf32> to vector<8x32xf32>
    %31 = arith.addf %29, %30 : vector<8x32xf32>
    %c0_16 = arith.constant 0 : index
    %c0_17 = arith.constant 0 : index
    %c0_18 = arith.constant 0 : index
    %32 = vector.load %arg4[%c0_16, %c0_17, %c0_18] : memref<1x1x8xf32, #tpu.memory_space<vmem>>, vector<1x1x8xf32>
    %33 = vector.shape_cast %32 : vector<1x1x8xf32> to vector<1x8xf32>
    %34 = arith.truncf %31 : vector<8x32xf32> to vector<8x32xbf16>
    %c0_19 = arith.constant 0 : index
    %c0_20 = arith.constant 0 : index
    %c0_21 = arith.constant 0 : index
    %35 = vector.load %arg7[%c0_19, %c0_20, %c0_21] : memref<2x32x96xbf16, #tpu.memory_space<vmem>>, vector<1x32x96xbf16>
    %36 = vector.shape_cast %35 : vector<1x32x96xbf16> to vector<32x96xbf16>
    %cst_22 = arith.constant dense<0.000000e+00> : vector<8x96xf32>
    %37 = tpu.matmul %34, %36, %cst_22 {dimension_numbers = #tpu.dot_dimension_numbers<[1], [0], [0], [1], [0, 0, 1, 1], [], []>} : vector<8x32xbf16>, vector<32x96xbf16>, vector<8x96xf32> -> vector<8x96xf32>
    %c0_23 = arith.constant 0 : index
    %c0_24 = arith.constant 0 : index
    %c0_25 = arith.constant 0 : index
    %38 = vector.load %arg8[%c0_23, %c0_24, %c0_25] : memref<2x1x96xf32, #tpu.memory_space<vmem>>, vector<1x1x96xf32>
    %39 = vector.shape_cast %38 : vector<1x1x96xf32> to vector<1x96xf32>
    %40 = vector.broadcast %39 : vector<1x96xf32> to vector<8x96xf32>
    %41 = arith.addf %37, %40 : vector<8x96xf32>
    %42 = vector.extract_strided_slice %41 {offsets = [0, 0], sizes = [8, 16], strides = [1, 1]} : vector<8x96xf32> to vector<8x16xf32>
    %cst_26 = arith.constant 2.500000e-01 : f32
    %43 = vector.broadcast %cst_26 : f32 to vector<8x16xf32>
    %44 = arith.mulf %42, %43 : vector<8x16xf32>
    %45 = vector.extract_strided_slice %41 {offsets = [0, 32], sizes = [8, 16], strides = [1, 1]} : vector<8x96xf32> to vector<8x16xf32>
    %46 = vector.extract_strided_slice %41 {offsets = [0, 64], sizes = [8, 16], strides = [1, 1]} : vector<8x96xf32> to vector<8x16xf32>
    %47 = arith.truncf %44 : vector<8x16xf32> to vector<8x16xbf16>
    %48 = arith.truncf %45 : vector<8x16xf32> to vector<8x16xbf16>
    %cst_27 = arith.constant dense<0.000000e+00> : vector<8x8xf32>
    %49 = tpu.matmul %47, %48, %cst_27 {dimension_numbers = #tpu.dot_dimension_numbers<[1], [1], [0], [0], [0, 0, 1, 0], [], []>} : vector<8x16xbf16>, vector<8x16xbf16>, vector<8x8xf32> -> vector<8x8xf32>
    %50 = vector.broadcast %33 : vector<1x8xf32> to vector<8x8xf32>
    %51 = arith.addf %49, %50 : vector<8x8xf32>
    %cst_28 = arith.constant dense<0xFF800000> : vector<8xf32>
    %52 = vector.multi_reduction <maximumf>, %51, %cst_28 [1] : vector<8x8xf32> to vector<8xf32>
    %53 = vector.shape_cast %52 : vector<8xf32> to vector<8x1xf32>
    %54 = vector.broadcast %53 : vector<8x1xf32> to vector<8x8xf32>
    %55 = arith.subf %51, %54 : vector<8x8xf32>
    %56 = math.exp %55 : vector<8x8xf32>
    %cst_29 = arith.constant dense<0.000000e+00> : vector<8xf32>
    %57 = vector.multi_reduction <add>, %56, %cst_29 [1] : vector<8x8xf32> to vector<8xf32>
    %58 = vector.shape_cast %57 : vector<8xf32> to vector<8x1xf32>
    %59 = vector.broadcast %58 : vector<8x1xf32> to vector<8x8xf32>
    %60 = arith.divf %56, %59 : vector<8x8xf32>
    %61 = arith.truncf %60 : vector<8x8xf32> to vector<8x8xbf16>
    %62 = arith.truncf %46 : vector<8x16xf32> to vector<8x16xbf16>
    %cst_30 = arith.constant dense<0.000000e+00> : vector<8x16xf32>
    %63 = tpu.matmul %61, %62, %cst_30 {dimension_numbers = #tpu.dot_dimension_numbers<[1], [0], [0], [1], [0, 0, 1, 1], [], []>} : vector<8x8xbf16>, vector<8x16xbf16>, vector<8x16xf32> -> vector<8x16xf32>
    %64 = vector.extract_strided_slice %41 {offsets = [0, 16], sizes = [8, 16], strides = [1, 1]} : vector<8x96xf32> to vector<8x16xf32>
    %cst_31 = arith.constant 2.500000e-01 : f32
    %65 = vector.broadcast %cst_31 : f32 to vector<8x16xf32>
    %66 = arith.mulf %64, %65 : vector<8x16xf32>
    %67 = vector.extract_strided_slice %41 {offsets = [0, 48], sizes = [8, 16], strides = [1, 1]} : vector<8x96xf32> to vector<8x16xf32>
    %68 = vector.extract_strided_slice %41 {offsets = [0, 80], sizes = [8, 16], strides = [1, 1]} : vector<8x96xf32> to vector<8x16xf32>
    %69 = arith.truncf %66 : vector<8x16xf32> to vector<8x16xbf16>
    %70 = arith.truncf %67 : vector<8x16xf32> to vector<8x16xbf16>
    %cst_32 = arith.constant dense<0.000000e+00> : vector<8x8xf32>
    %71 = tpu.matmul %69, %70, %cst_32 {dimension_numbers = #tpu.dot_dimension_numbers<[1], [1], [0], [0], [0, 0, 1, 0], [], []>} : vector<8x16xbf16>, vector<8x16xbf16>, vector<8x8xf32> -> vector<8x8xf32>
    %72 = vector.broadcast %33 : vector<1x8xf32> to vector<8x8xf32>
    %73 = arith.addf %71, %72 : vector<8x8xf32>
    %cst_33 = arith.constant dense<0xFF800000> : vector<8xf32>
    %74 = vector.multi_reduction <maximumf>, %73, %cst_33 [1] : vector<8x8xf32> to vector<8xf32>
    %75 = vector.shape_cast %74 : vector<8xf32> to vector<8x1xf32>
    %76 = vector.broadcast %75 : vector<8x1xf32> to vector<8x8xf32>
    %77 = arith.subf %73, %76 : vector<8x8xf32>
    %78 = math.exp %77 : vector<8x8xf32>
    %cst_34 = arith.constant dense<0.000000e+00> : vector<8xf32>
    %79 = vector.multi_reduction <add>, %78, %cst_34 [1] : vector<8x8xf32> to vector<8xf32>
    %80 = vector.shape_cast %79 : vector<8xf32> to vector<8x1xf32>
    %81 = vector.broadcast %80 : vector<8x1xf32> to vector<8x8xf32>
    %82 = arith.divf %78, %81 : vector<8x8xf32>
    %83 = arith.truncf %82 : vector<8x8xf32> to vector<8x8xbf16>
    %84 = arith.truncf %68 : vector<8x16xf32> to vector<8x16xbf16>
    %cst_35 = arith.constant dense<0.000000e+00> : vector<8x16xf32>
    %85 = tpu.matmul %83, %84, %cst_35 {dimension_numbers = #tpu.dot_dimension_numbers<[1], [0], [0], [1], [0, 0, 1, 1], [], []>} : vector<8x8xbf16>, vector<8x16xbf16>, vector<8x16xf32> -> vector<8x16xf32>
    %86 = tpu.concatenate %63, %85 in 1 : vector<8x16xf32>, vector<8x16xf32> -> vector<8x32xf32>
    %87 = arith.truncf %86 : vector<8x32xf32> to vector<8x32xbf16>
    %c0_36 = arith.constant 0 : index
    %c0_37 = arith.constant 0 : index
    %c0_38 = arith.constant 0 : index
    %88 = vector.load %arg9[%c0_36, %c0_37, %c0_38] : memref<2x32x32xbf16, #tpu.memory_space<vmem>>, vector<1x32x32xbf16>
    %89 = vector.shape_cast %88 : vector<1x32x32xbf16> to vector<32x32xbf16>
    %cst_39 = arith.constant dense<0.000000e+00> : vector<8x32xf32>
    %90 = tpu.matmul %87, %89, %cst_39 {dimension_numbers = #tpu.dot_dimension_numbers<[1], [0], [0], [1], [0, 0, 1, 1], [], []>} : vector<8x32xbf16>, vector<32x32xbf16>, vector<8x32xf32> -> vector<8x32xf32>
    %c0_40 = arith.constant 0 : index
    %c0_41 = arith.constant 0 : index
    %c0_42 = arith.constant 0 : index
    %91 = vector.load %arg10[%c0_40, %c0_41, %c0_42] : memref<2x1x32xf32, #tpu.memory_space<vmem>>, vector<1x1x32xf32>
    %92 = vector.shape_cast %91 : vector<1x1x32xf32> to vector<1x32xf32>
    %93 = vector.broadcast %92 : vector<1x32xf32> to vector<8x32xf32>
    %94 = arith.addf %90, %93 : vector<8x32xf32>
    %95 = arith.addf %31, %94 : vector<8x32xf32>
    %c0_43 = arith.constant 0 : index
    %c0_44 = arith.constant 0 : index
    %c0_45 = arith.constant 0 : index
    %96 = vector.load %arg11[%c0_43, %c0_44, %c0_45] : memref<2x1x32xf32, #tpu.memory_space<vmem>>, vector<1x1x32xf32>
    %97 = vector.shape_cast %96 : vector<1x1x32xf32> to vector<1x32xf32>
    %c0_46 = arith.constant 0 : index
    %c0_47 = arith.constant 0 : index
    %c0_48 = arith.constant 0 : index
    %98 = vector.load %arg12[%c0_46, %c0_47, %c0_48] : memref<2x1x32xf32, #tpu.memory_space<vmem>>, vector<1x1x32xf32>
    %99 = vector.shape_cast %98 : vector<1x1x32xf32> to vector<1x32xf32>
    %cst_49 = arith.constant dense<0.000000e+00> : vector<8xf32>
    %100 = vector.multi_reduction <add>, %95, %cst_49 [1] : vector<8x32xf32> to vector<8xf32>
    %101 = vector.shape_cast %100 : vector<8xf32> to vector<8x1xf32>
    %cst_50 = arith.constant 3.200000e+01 : f32
    %102 = vector.broadcast %cst_50 : f32 to vector<8x1xf32>
    %103 = arith.divf %101, %102 : vector<8x1xf32>
    %104 = vector.broadcast %103 : vector<8x1xf32> to vector<8x32xf32>
    %105 = arith.subf %95, %104 : vector<8x32xf32>
    %106 = arith.mulf %105, %105 : vector<8x32xf32>
    %cst_51 = arith.constant dense<0.000000e+00> : vector<8xf32>
    %107 = vector.multi_reduction <add>, %106, %cst_51 [1] : vector<8x32xf32> to vector<8xf32>
    %108 = vector.shape_cast %107 : vector<8xf32> to vector<8x1xf32>
    %cst_52 = arith.constant 3.200000e+01 : f32
    %109 = vector.broadcast %cst_52 : f32 to vector<8x1xf32>
    %110 = arith.divf %108, %109 : vector<8x1xf32>
    %111 = vector.broadcast %103 : vector<8x1xf32> to vector<8x32xf32>
    %112 = arith.subf %95, %111 : vector<8x32xf32>
    %cst_53 = arith.constant 9.99999996E-13 : f32
    %113 = vector.broadcast %cst_53 : f32 to vector<8x1xf32>
    %114 = arith.addf %110, %113 : vector<8x1xf32>
    %115 = math.rsqrt %114 : vector<8x1xf32>
    %116 = vector.broadcast %115 : vector<8x1xf32> to vector<8x32xf32>
    %117 = arith.mulf %112, %116 : vector<8x32xf32>
    %118 = vector.broadcast %97 : vector<1x32xf32> to vector<8x32xf32>
    %119 = arith.mulf %117, %118 : vector<8x32xf32>
    %120 = vector.broadcast %99 : vector<1x32xf32> to vector<8x32xf32>
    %121 = arith.addf %119, %120 : vector<8x32xf32>
    %122 = arith.truncf %121 : vector<8x32xf32> to vector<8x32xbf16>
    %c0_54 = arith.constant 0 : index
    %c0_55 = arith.constant 0 : index
    %c0_56 = arith.constant 0 : index
    %123 = vector.load %arg13[%c0_54, %c0_55, %c0_56] : memref<2x32x64xbf16, #tpu.memory_space<vmem>>, vector<1x32x64xbf16>
    %124 = vector.shape_cast %123 : vector<1x32x64xbf16> to vector<32x64xbf16>
    %cst_57 = arith.constant dense<0.000000e+00> : vector<8x64xf32>
    %125 = tpu.matmul %122, %124, %cst_57 {dimension_numbers = #tpu.dot_dimension_numbers<[1], [0], [0], [1], [0, 0, 1, 1], [], []>} : vector<8x32xbf16>, vector<32x64xbf16>, vector<8x64xf32> -> vector<8x64xf32>
    %c0_58 = arith.constant 0 : index
    %c0_59 = arith.constant 0 : index
    %c0_60 = arith.constant 0 : index
    %126 = vector.load %arg14[%c0_58, %c0_59, %c0_60] : memref<2x1x64xf32, #tpu.memory_space<vmem>>, vector<1x1x64xf32>
    %127 = vector.shape_cast %126 : vector<1x1x64xf32> to vector<1x64xf32>
    %128 = vector.broadcast %127 : vector<1x64xf32> to vector<8x64xf32>
    %129 = arith.addf %125, %128 : vector<8x64xf32>
    %cst_61 = arith.constant 5.000000e-01 : f32
    %130 = vector.broadcast %cst_61 : f32 to vector<8x64xf32>
    %131 = arith.mulf %130, %129 : vector<8x64xf32>
    %cst_62 = arith.constant 4.471500e-02 : f32
    %132 = vector.broadcast %cst_62 : f32 to vector<8x64xf32>
    %133 = arith.mulf %132, %129 : vector<8x64xf32>
    %134 = arith.mulf %133, %129 : vector<8x64xf32>
    %135 = arith.mulf %134, %129 : vector<8x64xf32>
    %136 = arith.addf %129, %135 : vector<8x64xf32>
    %cst_63 = arith.constant 0.797884583 : f32
    %137 = vector.broadcast %cst_63 : f32 to vector<8x64xf32>
    %138 = arith.mulf %137, %136 : vector<8x64xf32>
    %139 = math.tanh %138 : vector<8x64xf32>
    %cst_64 = arith.constant 1.000000e+00 : f32
    %140 = vector.broadcast %cst_64 : f32 to vector<8x64xf32>
    %141 = arith.addf %140, %139 : vector<8x64xf32>
    %142 = arith.mulf %131, %141 : vector<8x64xf32>
    %143 = arith.truncf %142 : vector<8x64xf32> to vector<8x64xbf16>
    %c0_65 = arith.constant 0 : index
    %c0_66 = arith.constant 0 : index
    %c0_67 = arith.constant 0 : index
    %144 = vector.load %arg15[%c0_65, %c0_66, %c0_67] : memref<2x64x32xbf16, #tpu.memory_space<vmem>>, vector<1x64x32xbf16>
    %145 = vector.shape_cast %144 : vector<1x64x32xbf16> to vector<64x32xbf16>
    %cst_68 = arith.constant dense<0.000000e+00> : vector<8x32xf32>
    %146 = tpu.matmul %143, %145, %cst_68 {dimension_numbers = #tpu.dot_dimension_numbers<[1], [0], [0], [1], [0, 0, 1, 1], [], []>} : vector<8x64xbf16>, vector<64x32xbf16>, vector<8x32xf32> -> vector<8x32xf32>
    %c0_69 = arith.constant 0 : index
    %c0_70 = arith.constant 0 : index
    %c0_71 = arith.constant 0 : index
    %147 = vector.load %arg16[%c0_69, %c0_70, %c0_71] : memref<2x1x32xf32, #tpu.memory_space<vmem>>, vector<1x1x32xf32>
    %148 = vector.shape_cast %147 : vector<1x1x32xf32> to vector<1x32xf32>
    %149 = vector.broadcast %148 : vector<1x32xf32> to vector<8x32xf32>
    %150 = arith.addf %146, %149 : vector<8x32xf32>
    %151 = arith.addf %121, %150 : vector<8x32xf32>
    %c0_72 = arith.constant 0 : index
    %c0_73 = arith.constant 0 : index
    %c0_74 = arith.constant 0 : index
    %152 = vector.load %arg17[%c0_72, %c0_73, %c0_74] : memref<2x1x32xf32, #tpu.memory_space<vmem>>, vector<1x1x32xf32>
    %153 = vector.shape_cast %152 : vector<1x1x32xf32> to vector<1x32xf32>
    %c0_75 = arith.constant 0 : index
    %c0_76 = arith.constant 0 : index
    %c0_77 = arith.constant 0 : index
    %154 = vector.load %arg18[%c0_75, %c0_76, %c0_77] : memref<2x1x32xf32, #tpu.memory_space<vmem>>, vector<1x1x32xf32>
    %155 = vector.shape_cast %154 : vector<1x1x32xf32> to vector<1x32xf32>
    %cst_78 = arith.constant dense<0.000000e+00> : vector<8xf32>
    %156 = vector.multi_reduction <add>, %151, %cst_78 [1] : vector<8x32xf32> to vector<8xf32>
    %157 = vector.shape_cast %156 : vector<8xf32> to vector<8x1xf32>
    %cst_79 = arith.constant 3.200000e+01 : f32
    %158 = vector.broadcast %cst_79 : f32 to vector<8x1xf32>
    %159 = arith.divf %157, %158 : vector<8x1xf32>
    %160 = vector.broadcast %159 : vector<8x1xf32> to vector<8x32xf32>
    %161 = arith.subf %151, %160 : vector<8x32xf32>
    %162 = arith.mulf %161, %161 : vector<8x32xf32>
    %cst_80 = arith.constant dense<0.000000e+00> : vector<8xf32>
    %163 = vector.multi_reduction <add>, %162, %cst_80 [1] : vector<8x32xf32> to vector<8xf32>
    %164 = vector.shape_cast %163 : vector<8xf32> to vector<8x1xf32>
    %cst_81 = arith.constant 3.200000e+01 : f32
    %165 = vector.broadcast %cst_81 : f32 to vector<8x1xf32>
    %166 = arith.divf %164, %165 : vector<8x1xf32>
    %167 = vector.broadcast %159 : vector<8x1xf32> to vector<8x32xf32>
    %168 = arith.subf %151, %167 : vector<8x32xf32>
    %cst_82 = arith.constant 9.99999996E-13 : f32
    %169 = vector.broadcast %cst_82 : f32 to vector<8x1xf32>
    %170 = arith.addf %166, %169 : vector<8x1xf32>
    %171 = math.rsqrt %170 : vector<8x1xf32>
    %172 = vector.broadcast %171 : vector<8x1xf32> to vector<8x32xf32>
    %173 = arith.mulf %168, %172 : vector<8x32xf32>
    %174 = vector.broadcast %153 : vector<1x32xf32> to vector<8x32xf32>
    %175 = arith.mulf %173, %174 : vector<8x32xf32>
    %176 = vector.broadcast %155 : vector<1x32xf32> to vector<8x32xf32>
    %177 = arith.addf %175, %176 : vector<8x32xf32>
    %178 = arith.truncf %177 : vector<8x32xf32> to vector<8x32xbf16>
    %c1 = arith.constant 1 : index
    %c0_83 = arith.constant 0 : index
    %c0_84 = arith.constant 0 : index
    %179 = vector.load %arg7[%c1, %c0_83, %c0_84] : memref<2x32x96xbf16, #tpu.memory_space<vmem>>, vector<1x32x96xbf16>
    %180 = vector.shape_cast %179 : vector<1x32x96xbf16> to vector<32x96xbf16>
    %cst_85 = arith.constant dense<0.000000e+00> : vector<8x96xf32>
    %181 = tpu.matmul %178, %180, %cst_85 {dimension_numbers = #tpu.dot_dimension_numbers<[1], [0], [0], [1], [0, 0, 1, 1], [], []>} : vector<8x32xbf16>, vector<32x96xbf16>, vector<8x96xf32> -> vector<8x96xf32>
    %c1_86 = arith.constant 1 : index
    %c0_87 = arith.constant 0 : index
    %c0_88 = arith.constant 0 : index
    %182 = vector.load %arg8[%c1_86, %c0_87, %c0_88] : memref<2x1x96xf32, #tpu.memory_space<vmem>>, vector<1x1x96xf32>
    %183 = vector.shape_cast %182 : vector<1x1x96xf32> to vector<1x96xf32>
    %184 = vector.broadcast %183 : vector<1x96xf32> to vector<8x96xf32>
    %185 = arith.addf %181, %184 : vector<8x96xf32>
    %186 = vector.extract_strided_slice %185 {offsets = [0, 0], sizes = [8, 16], strides = [1, 1]} : vector<8x96xf32> to vector<8x16xf32>
    %cst_89 = arith.constant 2.500000e-01 : f32
    %187 = vector.broadcast %cst_89 : f32 to vector<8x16xf32>
    %188 = arith.mulf %186, %187 : vector<8x16xf32>
    %189 = vector.extract_strided_slice %185 {offsets = [0, 32], sizes = [8, 16], strides = [1, 1]} : vector<8x96xf32> to vector<8x16xf32>
    %190 = vector.extract_strided_slice %185 {offsets = [0, 64], sizes = [8, 16], strides = [1, 1]} : vector<8x96xf32> to vector<8x16xf32>
    %191 = arith.truncf %188 : vector<8x16xf32> to vector<8x16xbf16>
    %192 = arith.truncf %189 : vector<8x16xf32> to vector<8x16xbf16>
    %cst_90 = arith.constant dense<0.000000e+00> : vector<8x8xf32>
    %193 = tpu.matmul %191, %192, %cst_90 {dimension_numbers = #tpu.dot_dimension_numbers<[1], [1], [0], [0], [0, 0, 1, 0], [], []>} : vector<8x16xbf16>, vector<8x16xbf16>, vector<8x8xf32> -> vector<8x8xf32>
    %194 = vector.broadcast %33 : vector<1x8xf32> to vector<8x8xf32>
    %195 = arith.addf %193, %194 : vector<8x8xf32>
    %cst_91 = arith.constant dense<0xFF800000> : vector<8xf32>
    %196 = vector.multi_reduction <maximumf>, %195, %cst_91 [1] : vector<8x8xf32> to vector<8xf32>
    %197 = vector.shape_cast %196 : vector<8xf32> to vector<8x1xf32>
    %198 = vector.broadcast %197 : vector<8x1xf32> to vector<8x8xf32>
    %199 = arith.subf %195, %198 : vector<8x8xf32>
    %200 = math.exp %199 : vector<8x8xf32>
    %cst_92 = arith.constant dense<0.000000e+00> : vector<8xf32>
    %201 = vector.multi_reduction <add>, %200, %cst_92 [1] : vector<8x8xf32> to vector<8xf32>
    %202 = vector.shape_cast %201 : vector<8xf32> to vector<8x1xf32>
    %203 = vector.broadcast %202 : vector<8x1xf32> to vector<8x8xf32>
    %204 = arith.divf %200, %203 : vector<8x8xf32>
    %205 = arith.truncf %204 : vector<8x8xf32> to vector<8x8xbf16>
    %206 = arith.truncf %190 : vector<8x16xf32> to vector<8x16xbf16>
    %cst_93 = arith.constant dense<0.000000e+00> : vector<8x16xf32>
    %207 = tpu.matmul %205, %206, %cst_93 {dimension_numbers = #tpu.dot_dimension_numbers<[1], [0], [0], [1], [0, 0, 1, 1], [], []>} : vector<8x8xbf16>, vector<8x16xbf16>, vector<8x16xf32> -> vector<8x16xf32>
    %208 = vector.extract_strided_slice %185 {offsets = [0, 16], sizes = [8, 16], strides = [1, 1]} : vector<8x96xf32> to vector<8x16xf32>
    %cst_94 = arith.constant 2.500000e-01 : f32
    %209 = vector.broadcast %cst_94 : f32 to vector<8x16xf32>
    %210 = arith.mulf %208, %209 : vector<8x16xf32>
    %211 = vector.extract_strided_slice %185 {offsets = [0, 48], sizes = [8, 16], strides = [1, 1]} : vector<8x96xf32> to vector<8x16xf32>
    %212 = vector.extract_strided_slice %185 {offsets = [0, 80], sizes = [8, 16], strides = [1, 1]} : vector<8x96xf32> to vector<8x16xf32>
    %213 = arith.truncf %210 : vector<8x16xf32> to vector<8x16xbf16>
    %214 = arith.truncf %211 : vector<8x16xf32> to vector<8x16xbf16>
    %cst_95 = arith.constant dense<0.000000e+00> : vector<8x8xf32>
    %215 = tpu.matmul %213, %214, %cst_95 {dimension_numbers = #tpu.dot_dimension_numbers<[1], [1], [0], [0], [0, 0, 1, 0], [], []>} : vector<8x16xbf16>, vector<8x16xbf16>, vector<8x8xf32> -> vector<8x8xf32>
    %216 = vector.broadcast %33 : vector<1x8xf32> to vector<8x8xf32>
    %217 = arith.addf %215, %216 : vector<8x8xf32>
    %cst_96 = arith.constant dense<0xFF800000> : vector<8xf32>
    %218 = vector.multi_reduction <maximumf>, %217, %cst_96 [1] : vector<8x8xf32> to vector<8xf32>
    %219 = vector.shape_cast %218 : vector<8xf32> to vector<8x1xf32>
    %220 = vector.broadcast %219 : vector<8x1xf32> to vector<8x8xf32>
    %221 = arith.subf %217, %220 : vector<8x8xf32>
    %222 = math.exp %221 : vector<8x8xf32>
    %cst_97 = arith.constant dense<0.000000e+00> : vector<8xf32>
    %223 = vector.multi_reduction <add>, %222, %cst_97 [1] : vector<8x8xf32> to vector<8xf32>
    %224 = vector.shape_cast %223 : vector<8xf32> to vector<8x1xf32>
    %225 = vector.broadcast %224 : vector<8x1xf32> to vector<8x8xf32>
    %226 = arith.divf %222, %225 : vector<8x8xf32>
    %227 = arith.truncf %226 : vector<8x8xf32> to vector<8x8xbf16>
    %228 = arith.truncf %212 : vector<8x16xf32> to vector<8x16xbf16>
    %cst_98 = arith.constant dense<0.000000e+00> : vector<8x16xf32>
    %229 = tpu.matmul %227, %228, %cst_98 {dimension_numbers = #tpu.dot_dimension_numbers<[1], [0], [0], [1], [0, 0, 1, 1], [], []>} : vector<8x8xbf16>, vector<8x16xbf16>, vector<8x16xf32> -> vector<8x16xf32>
    %230 = tpu.concatenate %207, %229 in 1 : vector<8x16xf32>, vector<8x16xf32> -> vector<8x32xf32>
    %231 = arith.truncf %230 : vector<8x32xf32> to vector<8x32xbf16>
    %c1_99 = arith.constant 1 : index
    %c0_100 = arith.constant 0 : index
    %c0_101 = arith.constant 0 : index
    %232 = vector.load %arg9[%c1_99, %c0_100, %c0_101] : memref<2x32x32xbf16, #tpu.memory_space<vmem>>, vector<1x32x32xbf16>
    %233 = vector.shape_cast %232 : vector<1x32x32xbf16> to vector<32x32xbf16>
    %cst_102 = arith.constant dense<0.000000e+00> : vector<8x32xf32>
    %234 = tpu.matmul %231, %233, %cst_102 {dimension_numbers = #tpu.dot_dimension_numbers<[1], [0], [0], [1], [0, 0, 1, 1], [], []>} : vector<8x32xbf16>, vector<32x32xbf16>, vector<8x32xf32> -> vector<8x32xf32>
    %c1_103 = arith.constant 1 : index
    %c0_104 = arith.constant 0 : index
    %c0_105 = arith.constant 0 : index
    %235 = vector.load %arg10[%c1_103, %c0_104, %c0_105] : memref<2x1x32xf32, #tpu.memory_space<vmem>>, vector<1x1x32xf32>
    %236 = vector.shape_cast %235 : vector<1x1x32xf32> to vector<1x32xf32>
    %237 = vector.broadcast %236 : vector<1x32xf32> to vector<8x32xf32>
    %238 = arith.addf %234, %237 : vector<8x32xf32>
    %239 = arith.addf %177, %238 : vector<8x32xf32>
    %c1_106 = arith.constant 1 : index
    %c0_107 = arith.constant 0 : index
    %c0_108 = arith.constant 0 : index
    %240 = vector.load %arg11[%c1_106, %c0_107, %c0_108] : memref<2x1x32xf32, #tpu.memory_space<vmem>>, vector<1x1x32xf32>
    %241 = vector.shape_cast %240 : vector<1x1x32xf32> to vector<1x32xf32>
    %c1_109 = arith.constant 1 : index
    %c0_110 = arith.constant 0 : index
    %c0_111 = arith.constant 0 : index
    %242 = vector.load %arg12[%c1_109, %c0_110, %c0_111] : memref<2x1x32xf32, #tpu.memory_space<vmem>>, vector<1x1x32xf32>
    %243 = vector.shape_cast %242 : vector<1x1x32xf32> to vector<1x32xf32>
    %cst_112 = arith.constant dense<0.000000e+00> : vector<8xf32>
    %244 = vector.multi_reduction <add>, %239, %cst_112 [1] : vector<8x32xf32> to vector<8xf32>
    %245 = vector.shape_cast %244 : vector<8xf32> to vector<8x1xf32>
    %cst_113 = arith.constant 3.200000e+01 : f32
    %246 = vector.broadcast %cst_113 : f32 to vector<8x1xf32>
    %247 = arith.divf %245, %246 : vector<8x1xf32>
    %248 = vector.broadcast %247 : vector<8x1xf32> to vector<8x32xf32>
    %249 = arith.subf %239, %248 : vector<8x32xf32>
    %250 = arith.mulf %249, %249 : vector<8x32xf32>
    %cst_114 = arith.constant dense<0.000000e+00> : vector<8xf32>
    %251 = vector.multi_reduction <add>, %250, %cst_114 [1] : vector<8x32xf32> to vector<8xf32>
    %252 = vector.shape_cast %251 : vector<8xf32> to vector<8x1xf32>
    %cst_115 = arith.constant 3.200000e+01 : f32
    %253 = vector.broadcast %cst_115 : f32 to vector<8x1xf32>
    %254 = arith.divf %252, %253 : vector<8x1xf32>
    %255 = vector.broadcast %247 : vector<8x1xf32> to vector<8x32xf32>
    %256 = arith.subf %239, %255 : vector<8x32xf32>
    %cst_116 = arith.constant 9.99999996E-13 : f32
    %257 = vector.broadcast %cst_116 : f32 to vector<8x1xf32>
    %258 = arith.addf %254, %257 : vector<8x1xf32>
    %259 = math.rsqrt %258 : vector<8x1xf32>
    %260 = vector.broadcast %259 : vector<8x1xf32> to vector<8x32xf32>
    %261 = arith.mulf %256, %260 : vector<8x32xf32>
    %262 = vector.broadcast %241 : vector<1x32xf32> to vector<8x32xf32>
    %263 = arith.mulf %261, %262 : vector<8x32xf32>
    %264 = vector.broadcast %243 : vector<1x32xf32> to vector<8x32xf32>
    %265 = arith.addf %263, %264 : vector<8x32xf32>
    %266 = arith.truncf %265 : vector<8x32xf32> to vector<8x32xbf16>
    %c1_117 = arith.constant 1 : index
    %c0_118 = arith.constant 0 : index
    %c0_119 = arith.constant 0 : index
    %267 = vector.load %arg13[%c1_117, %c0_118, %c0_119] : memref<2x32x64xbf16, #tpu.memory_space<vmem>>, vector<1x32x64xbf16>
    %268 = vector.shape_cast %267 : vector<1x32x64xbf16> to vector<32x64xbf16>
    %cst_120 = arith.constant dense<0.000000e+00> : vector<8x64xf32>
    %269 = tpu.matmul %266, %268, %cst_120 {dimension_numbers = #tpu.dot_dimension_numbers<[1], [0], [0], [1], [0, 0, 1, 1], [], []>} : vector<8x32xbf16>, vector<32x64xbf16>, vector<8x64xf32> -> vector<8x64xf32>
    %c1_121 = arith.constant 1 : index
    %c0_122 = arith.constant 0 : index
    %c0_123 = arith.constant 0 : index
    %270 = vector.load %arg14[%c1_121, %c0_122, %c0_123] : memref<2x1x64xf32, #tpu.memory_space<vmem>>, vector<1x1x64xf32>
    %271 = vector.shape_cast %270 : vector<1x1x64xf32> to vector<1x64xf32>
    %272 = vector.broadcast %271 : vector<1x64xf32> to vector<8x64xf32>
    %273 = arith.addf %269, %272 : vector<8x64xf32>
    %cst_124 = arith.constant 5.000000e-01 : f32
    %274 = vector.broadcast %cst_124 : f32 to vector<8x64xf32>
    %275 = arith.mulf %274, %273 : vector<8x64xf32>
    %cst_125 = arith.constant 4.471500e-02 : f32
    %276 = vector.broadcast %cst_125 : f32 to vector<8x64xf32>
    %277 = arith.mulf %276, %273 : vector<8x64xf32>
    %278 = arith.mulf %277, %273 : vector<8x64xf32>
    %279 = arith.mulf %278, %273 : vector<8x64xf32>
    %280 = arith.addf %273, %279 : vector<8x64xf32>
    %cst_126 = arith.constant 0.797884583 : f32
    %281 = vector.broadcast %cst_126 : f32 to vector<8x64xf32>
    %282 = arith.mulf %281, %280 : vector<8x64xf32>
    %283 = math.tanh %282 : vector<8x64xf32>
    %cst_127 = arith.constant 1.000000e+00 : f32
    %284 = vector.broadcast %cst_127 : f32 to vector<8x64xf32>
    %285 = arith.addf %284, %283 : vector<8x64xf32>
    %286 = arith.mulf %275, %285 : vector<8x64xf32>
    %287 = arith.truncf %286 : vector<8x64xf32> to vector<8x64xbf16>
    %c1_128 = arith.constant 1 : index
    %c0_129 = arith.constant 0 : index
    %c0_130 = arith.constant 0 : index
    %288 = vector.load %arg15[%c1_128, %c0_129, %c0_130] : memref<2x64x32xbf16, #tpu.memory_space<vmem>>, vector<1x64x32xbf16>
    %289 = vector.shape_cast %288 : vector<1x64x32xbf16> to vector<64x32xbf16>
    %cst_131 = arith.constant dense<0.000000e+00> : vector<8x32xf32>
    %290 = tpu.matmul %287, %289, %cst_131 {dimension_numbers = #tpu.dot_dimension_numbers<[1], [0], [0], [1], [0, 0, 1, 1], [], []>} : vector<8x64xbf16>, vector<64x32xbf16>, vector<8x32xf32> -> vector<8x32xf32>
    %c1_132 = arith.constant 1 : index
    %c0_133 = arith.constant 0 : index
    %c0_134 = arith.constant 0 : index
    %291 = vector.load %arg16[%c1_132, %c0_133, %c0_134] : memref<2x1x32xf32, #tpu.memory_space<vmem>>, vector<1x1x32xf32>
    %292 = vector.shape_cast %291 : vector<1x1x32xf32> to vector<1x32xf32>
    %293 = vector.broadcast %292 : vector<1x32xf32> to vector<8x32xf32>
    %294 = arith.addf %290, %293 : vector<8x32xf32>
    %295 = arith.addf %265, %294 : vector<8x32xf32>
    %c1_135 = arith.constant 1 : index
    %c0_136 = arith.constant 0 : index
    %c0_137 = arith.constant 0 : index
    %296 = vector.load %arg17[%c1_135, %c0_136, %c0_137] : memref<2x1x32xf32, #tpu.memory_space<vmem>>, vector<1x1x32xf32>
    %297 = vector.shape_cast %296 : vector<1x1x32xf32> to vector<1x32xf32>
    %c1_138 = arith.constant 1 : index
    %c0_139 = arith.constant 0 : index
    %c0_140 = arith.constant 0 : index
    %298 = vector.load %arg18[%c1_138, %c0_139, %c0_140] : memref<2x1x32xf32, #tpu.memory_space<vmem>>, vector<1x1x32xf32>
    %299 = vector.shape_cast %298 : vector<1x1x32xf32> to vector<1x32xf32>
    %cst_141 = arith.constant dense<0.000000e+00> : vector<8xf32>
    %300 = vector.multi_reduction <add>, %295, %cst_141 [1] : vector<8x32xf32> to vector<8xf32>
    %301 = vector.shape_cast %300 : vector<8xf32> to vector<8x1xf32>
    %cst_142 = arith.constant 3.200000e+01 : f32
    %302 = vector.broadcast %cst_142 : f32 to vector<8x1xf32>
    %303 = arith.divf %301, %302 : vector<8x1xf32>
    %304 = vector.broadcast %303 : vector<8x1xf32> to vector<8x32xf32>
    %305 = arith.subf %295, %304 : vector<8x32xf32>
    %306 = arith.mulf %305, %305 : vector<8x32xf32>
    %cst_143 = arith.constant dense<0.000000e+00> : vector<8xf32>
    %307 = vector.multi_reduction <add>, %306, %cst_143 [1] : vector<8x32xf32> to vector<8xf32>
    %308 = vector.shape_cast %307 : vector<8xf32> to vector<8x1xf32>
    %cst_144 = arith.constant 3.200000e+01 : f32
    %309 = vector.broadcast %cst_144 : f32 to vector<8x1xf32>
    %310 = arith.divf %308, %309 : vector<8x1xf32>
    %311 = vector.broadcast %303 : vector<8x1xf32> to vector<8x32xf32>
    %312 = arith.subf %295, %311 : vector<8x32xf32>
    %cst_145 = arith.constant 9.99999996E-13 : f32
    %313 = vector.broadcast %cst_145 : f32 to vector<8x1xf32>
    %314 = arith.addf %310, %313 : vector<8x1xf32>
    %315 = math.rsqrt %314 : vector<8x1xf32>
    %316 = vector.broadcast %315 : vector<8x1xf32> to vector<8x32xf32>
    %317 = arith.mulf %312, %316 : vector<8x32xf32>
    %318 = vector.broadcast %297 : vector<1x32xf32> to vector<8x32xf32>
    %319 = arith.mulf %317, %318 : vector<8x32xf32>
    %320 = vector.broadcast %299 : vector<1x32xf32> to vector<8x32xf32>
    %321 = arith.addf %319, %320 : vector<8x32xf32>
    %c0_146 = arith.constant 0 : index
    %c0_147 = arith.constant 0 : index
    %c0_148 = arith.constant 0 : index
    %322 = vector.load %arg19[%c0_146, %c0_147, %c0_148] : memref<1x8x32xf32, #tpu.memory_space<vmem>>, vector<1x8x32xf32>
    %323 = vector.shape_cast %322 : vector<1x8x32xf32> to vector<8x32xf32>
    %324 = vector.shape_cast %321 : vector<8x32xf32> to vector<1x8x32xf32>
    tpu.vector_store %arg19[%c0_146, %c0_147, %c0_148], %324 {strides = array<i32>} : memref<1x8x32xf32, #tpu.memory_space<vmem>>, vector<1x8x32xf32>,
    return
  }
  func.func @transform_0(%arg0: i32) -> (i32, i32, i32) {
    %c0_i32 = arith.constant 0 : i32
    %c0_i32_0 = arith.constant 0 : i32
    %c0_i32_1 = arith.constant 0 : i32
    return %arg0, %c0_i32, %c0_i32_0 : i32, i32, i32
  }
  func.func @transform_1(%arg0: i32) -> (i32, i32, i32) {
    %c0_i32 = arith.constant 0 : i32
    %c0_i32_0 = arith.constant 0 : i32
    %c0_i32_1 = arith.constant 0 : i32
    return %arg0, %c0_i32, %c0_i32_0 : i32, i32, i32
  }
  func.func @transform_2(%arg0: i32) -> (i32, i32, i32) {
    %c0_i32 = arith.constant 0 : i32
    %c0_i32_0 = arith.constant 0 : i32
    %c0_i32_1 = arith.constant 0 : i32
    return %arg0, %c0_i32, %c0_i32_0 : i32, i32, i32
  }
  func.func @transform_3(%arg0: i32) -> (i32, i32, i32) {
    %c0_i32 = arith.constant 0 : i32
    %c0_i32_0 = arith.constant 0 : i32
    %c0_i32_1 = arith.constant 0 : i32
    return %arg0, %c0_i32, %c0_i32_0 : i32, i32, i32
  }
  func.func @transform_4(%arg0: i32) -> (i32, i32) {
    %c0_i32 = arith.constant 0 : i32
    %c0_i32_0 = arith.constant 0 : i32
    %c0_i32_1 = arith.constant 0 : i32
    return %c0_i32, %c0_i32_0 : i32, i32
  }
  func.func @transform_5(%arg0: i32) -> (i32, i32) {
    %c0_i32 = arith.constant 0 : i32
    %c0_i32_0 = arith.constant 0 : i32
    %c0_i32_1 = arith.constant 0 : i32
    return %c0_i32, %c0_i32_0 : i32, i32
  }
  func.func @transform_6(%arg0: i32) -> (i32, i32, i32) {
    %c0_i32 = arith.constant 0 : i32
    %c0_i32_0 = arith.constant 0 : i32
    %c0_i32_1 = arith.constant 0 : i32
    %c0_i32_2 = arith.constant 0 : i32
    return %c0_i32, %c0_i32_0, %c0_i32_1 : i32, i32, i32
  }
  func.func @transform_7(%arg0: i32) -> (i32, i32, i32) {
    %c0_i32 = arith.constant 0 : i32
    %c0_i32_0 = arith.constant 0 : i32
    %c0_i32_1 = arith.constant 0 : i32
    %c0_i32_2 = arith.constant 0 : i32
    return %c0_i32, %c0_i32_0, %c0_i32_1 : i32, i32, i32
  }
  func.func @transform_8(%arg0: i32) -> (i32, i32, i32) {
    %c0_i32 = arith.constant 0 : i32
    %c0_i32_0 = arith.constant 0 : i32
    %c0_i32_1 = arith.constant 0 : i32
    %c0_i32_2 = arith.constant 0 : i32
    return %c0_i32, %c0_i32_0, %c0_i32_1 : i32, i32, i32
  }
  func.func @transform_9(%arg0: i32) -> (i32, i32, i32) {
    %c0_i32 = arith.constant 0 : i32
    %c0_i32_0 = arith.constant 0 : i32
    %c0_i32_1 = arith.constant 0 : i32
    %c0_i32_2 = arith.constant 0 : i32
    return %c0_i32, %c0_i32_0, %c0_i32_1 : i32, i32, i32
  }
  func.func @transform_10(%arg0: i32) -> (i32, i32, i32) {
    %c0_i32 = arith.constant 0 : i32
    %c0_i32_0 = arith.constant 0 : i32
    %c0_i32_1 = arith.constant 0 : i32
    %c0_i32_2 = arith.constant 0 : i32
    return %c0_i32, %c0_i32_0, %c0_i32_1 : i32, i32, i32
  }
  func.func @transform_11(%arg0: i32) -> (i32, i32, i32) {
    %c0_i32 = arith.constant 0 : i32
    %c0_i32_0 = arith.constant 0 : i32
    %c0_i32_1 = arith.constant 0 : i32
    %c0_i32_2 = arith.constant 0 : i32
    return %c0_i32, %c0_i32_0, %c0_i32_1 : i32, i32, i32
  }
  func.func @transform_12(%arg0: i32) -> (i32, i32, i32) {
    %c0_i32 = arith.constant 0 : i32
    %c0_i32_0 = arith.constant 0 : i32
    %c0_i32_1 = arith.constant 0 : i32
    %c0_i32_2 = arith.constant 0 : i32
    return %c0_i32, %c0_i32_0, %c0_i32_1 : i32, i32, i32
  }
  func.func @transform_13(%arg0: i32) -> (i32, i32, i32) {
    %c0_i32 = arith.constant 0 : i32
    %c0_i32_0 = arith.constant 0 : i32
    %c0_i32_1 = arith.constant 0 : i32
    %c0_i32_2 = arith.constant 0 : i32
    return %c0_i32, %c0_i32_0, %c0_i32_1 : i32, i32, i32
  }
  func.func @transform_14(%arg0: i32) -> (i32, i32, i32) {
    %c0_i32 = arith.constant 0 : i32
    %c0_i32_0 = arith.constant 0 : i32
    %c0_i32_1 = arith.constant 0 : i32
    %c0_i32_2 = arith.constant 0 : i32
    return %c0_i32, %c0_i32_0, %c0_i32_1 : i32, i32, i32
  }
  func.func @transform_15(%arg0: i32) -> (i32, i32, i32) {
    %c0_i32 = arith.constant 0 : i32
    %c0_i32_0 = arith.constant 0 : i32
    %c0_i32_1 = arith.constant 0 : i32
    %c0_i32_2 = arith.constant 0 : i32
    return %c0_i32, %c0_i32_0, %c0_i32_1 : i32, i32, i32
  }
  func.func @transform_16(%arg0: i32) -> (i32, i32, i32) {
    %c0_i32 = arith.constant 0 : i32
    %c0_i32_0 = arith.constant 0 : i32
    %c0_i32_1 = arith.constant 0 : i32
    %c0_i32_2 = arith.constant 0 : i32
    return %c0_i32, %c0_i32_0, %c0_i32_1 : i32, i32, i32
  }
  func.func @transform_17(%arg0: i32) -> (i32, i32, i32) {
    %c0_i32 = arith.constant 0 : i32
    %c0_i32_0 = arith.constant 0 : i32
    %c0_i32_1 = arith.constant 0 : i32
    %c0_i32_2 = arith.constant 0 : i32
    return %c0_i32, %c0_i32_0, %c0_i32_1 : i32, i32, i32
  }
  func.func @transform_18(%arg0: i32) -> (i32, i32, i32) {
    %c0_i32 = arith.constant 0 : i32
    %c0_i32_0 = arith.constant 0 : i32
    %c0_i32_1 = arith.constant 0 : i32
    return %arg0, %c0_i32, %c0_i32_0 : i32, i32, i32
  }
}

</mosaic_0001>

<llo_original>
// kernel: mul.0
$region0: #{mul.0}
  #allocation0 [shape = 's32[1]{0}', space=sflag, size = 0x4, scoped, tag = 'scoped memory for mul.0']
  %s0 = inlined_call_operand.vmem [shape: f32[2,1,8], index: 0, kind: input, shape index: {}]
  %s1 = inlined_call_operand.vmem [shape: f32[2,1,8], index: 1, kind: input, shape index: {}]
  %s2 = inlined_call_operand.vmem [shape: f32[2,1,8], index: 2, kind: output, shape index: {}]
  %v3 = vld [vmem:[%s0] sm:$0x1]
  %v4 = vld [vmem:[%s1] sm:$0x1]
  %5 = xla_tuple %v3, %v4
  %6 = xla_tuple %5
  %v7 = vmul.f32 %v3, %v4
  %8 = xla_tuple %v7
  %9 = vst [vmem:[%s2] sm:$0x1] %v7
  %s10 = scalar_lea.vmem %s0, 1
  %v11 = vld [vmem:[%s10] sm:$0x1]
  %s12 = scalar_lea.vmem %s1, 1
  %v13 = vld [vmem:[%s12] sm:$0x1]
  %14 = xla_tuple %v11, %v13
  %15 = xla_tuple %14
  %v16 = vmul.f32 %v11, %v13
  %17 = xla_tuple %v16
  %s18 = scalar_lea.vmem %s2, 1
  %19 = vst [vmem:[%s18] sm:$0x1] %v16

// kernel: bert_text_encoder_forward.1
$region0: #{bert_text_encoder_forward.1}
  #allocation0 [shape = 'u32[]', space=smem, size = 0x4, offset = 0x4, fixed_abs, tag = 'smem constant byte address 0x4 - core index']
  #allocation1 [shape = 'u32[144,128]{1,0:T(1,128)}', space=vmem, size = 0x12000, scoped, tag = 'internal scratch']
  %s0 = inlined_call_operand.vmem [shape: f32[2,8,32], index: 0, kind: input, shape index: {}]
  %s1 = inlined_call_operand.vmem [shape: f32[2,8,32], index: 1, kind: input, shape index: {}]
  %s2 = inlined_call_operand.vmem [shape: f32[2,8,32], index: 2, kind: input, shape index: {}]
  %s3 = inlined_call_operand.vmem [shape: f32[2,1,8], index: 3, kind: input, shape index: {}]
  %s4 = inlined_call_operand.vmem [shape: f32[1,32], index: 4, kind: input, shape index: {}]
  %s5 = inlined_call_operand.vmem [shape: f32[1,32], index: 5, kind: input, shape index: {}]
  %s6 = inlined_call_operand.vmem [shape: bf16[2,32,96], index: 6, kind: input, shape index: {}]
  %s7 = inlined_call_operand.vmem [shape: f32[2,1,96], index: 7, kind: input, shape index: {}]
  %s8 = inlined_call_operand.vmem [shape: bf16[2,32,32], index: 8, kind: input, shape index: {}]
  %s9 = inlined_call_operand.vmem [shape: f32[2,1,32], index: 9, kind: input, shape index: {}]
  %s10 = inlined_call_operand.vmem [shape: f32[2,1,32], index: 10, kind: input, shape index: {}]
  %s11 = inlined_call_operand.vmem [shape: f32[2,1,32], index: 11, kind: input, shape index: {}]
  %s12 = inlined_call_operand.vmem [shape: bf16[2,32,64], index: 12, kind: input, shape index: {}]
  %s13 = inlined_call_operand.vmem [shape: f32[2,1,64], index: 13, kind: input, shape index: {}]
  %s14 = inlined_call_operand.vmem [shape: bf16[2,64,32], index: 14, kind: input, shape index: {}]
  %s15 = inlined_call_operand.vmem [shape: f32[2,1,32], index: 15, kind: input, shape index: {}]
  %s16 = inlined_call_operand.vmem [shape: f32[2,1,32], index: 16, kind: input, shape index: {}]
  %s17 = inlined_call_operand.vmem [shape: f32[2,1,32], index: 17, kind: input, shape index: {}]
  %s18 = inlined_call_operand.hbm [shape: f32[2,8,32], index: 18, kind: output, shape index: {}]
  %s19 = sld [smem:[#allocation0]]
  $region105: #{bert_text_encoder_forward.1} parent=0
    _
  %s21 = ssub.s32 1, %s19
  %s22 = scalar_select 0, %s21, %s19
  $region1: #{bert_text_encoder_forward.1} parent=0
    #allocation2 [shape = 'u8[8192]{0}', space=vmem, size = 0x2000, scoped, tag = 'output window, operand 0']
    #allocation3 [shape = 's32[2]{0}', space=sflag, size = 0x8, scoped, tag = 'scoped memory for bert_text_encoder_forward.1']
    %23 = vsyncpa [#allocation3], 0
    %s24 = scalar_lea.sflag [#allocation3], 1
    %25 = vsyncpa %s24, 0
    loop: start=0, step=1, limit=4
    $region2: #{bert_text_encoder_forward.1} parent=1 // loop_pre_header
      _
    $region3: #{bert_text_encoder_forward.1} parent=1 // loop_header
      %s27 = sphi 0, %s31
      %p28 = scmp.ge.s32.totalorder %s27, 4
      %s37 = sphi 0, %s39
      %s40 = sphi 0, %s37
      %s41 = sphi 0, %s40
      %s57 = sphi 0, %s41
      %s63 = sphi 0, %s65
      %s66 = sphi 0, %s63
      %s67 = sphi 0, %s66
      %s83 = sphi 0, %s67
      %s89 = sphi 0, %s91
      %s92 = sphi 0, %s89
      %s93 = sphi 0, %s92
      %s109 = sphi 0, %s93
      %s115 = sphi 0, %s117
      %s118 = sphi 0, %s115
      %s119 = sphi 0, %s118
      %s135 = sphi 0, %s119
      %s139 = sphi 0, %s139
      %s141 = sphi 0, %s139
      %s142 = sphi 0, %s141
      %s156 = sphi 0, %s142
      %s160 = sphi 0, %s160
      %s162 = sphi 0, %s160
      %s163 = sphi 0, %s162
      %s177 = sphi 0, %s163
      %s181 = sphi 0, %s181
      %s183 = sphi 0, %s181
      %s184 = sphi 0, %s183
      %s198 = sphi 0, %s184
      %s202 = sphi 0, %s202
      %s204 = sphi 0, %s202
      %s205 = sphi 0, %s204
      %s219 = sphi 0, %s205
      %s223 = sphi 0, %s223
      %s225 = sphi 0, %s223
      %s226 = sphi 0, %s225
      %s240 = sphi 0, %s226
      %s244 = sphi 0, %s244
      %s246 = sphi 0, %s244
      %s247 = sphi 0, %s246
      %s261 = sphi 0, %s247
      %s265 = sphi 0, %s265
      %s267 = sphi 0, %s265
      %s268 = sphi 0, %s267
      %s282 = sphi 0, %s268
      %s286 = sphi 0, %s286
      %s288 = sphi 0, %s286
      %s289 = sphi 0, %s288
      %s303 = sphi 0, %s289
      %s307 = sphi 0, %s307
      %s309 = sphi 0, %s307
      %s310 = sphi 0, %s309
      %s324 = sphi 0, %s310
      %s328 = sphi 0, %s328
      %s330 = sphi 0, %s328
      %s331 = sphi 0, %s330
      %s345 = sphi 0, %s331
      %s349 = sphi 0, %s349
      %s351 = sphi 0, %s349
      %s352 = sphi 0, %s351
      %s366 = sphi 0, %s352
      %s370 = sphi 0, %s370
      %s372 = sphi 0, %s370
      %s373 = sphi 0, %s372
      %s387 = sphi 0, %s373
      %s391 = sphi 0, %s391
      %s393 = sphi 0, %s391
      %s394 = sphi 0, %s393
      %s408 = sphi 0, %s394
      %s412 = sphi 0, %s412
      %s414 = sphi 0, %s412
      %s415 = sphi 0, %s414
      %s429 = sphi 0, %s415
      %s435 = sphi 0, %s437
      %s438 = sphi 0, %s435
      %s439 = sphi 0, %s438
      %s455 = sphi 0, %s439
    $region4: #{bert_text_encoder_forward.1} parent=1 // loop_header_branch
      %30 = sbr.rel (%p28) target = $region8
    $region5: #{bert_text_encoder_forward.1} parent=1 // loop_body
      %s32 = ssub.s32 %s27, 1
      %s33 = ssub.s32 %s27, 2
      %s34 = sadd.s32 %s27, 1
      %s35 = ssub.s32 %s27, %s34
      %p36 = scmp.eq.s32.totalorder %s35, 0
      %s38 = sadd.s32 %s37, 1
      %s39 = scalar_select %p36, %s37, %s38
      %p42 = pneg %p36
      %p43 = scmp.eq.s32.totalorder %s27, 1
      %p44 = por %p42, %p43
      %p45 = scmp.ne.s32.totalorder %s37, %s40
      %p46 = scmp.eq.s32.totalorder %s27, 0
      %p47 = por %p45, %p46
      %p48 = scmp.ne.s32.totalorder %s37, %s40
      %p49 = scmp.eq.s32.totalorder %s32, 1
      %p50 = por %p48, %p49
      %p51 = scmp.ne.s32.totalorder %s40, %s41
      %p52 = scmp.eq.s32.totalorder %s32, 0
      %p53 = por %p51, %p52
      %p54 = scmp.ne.s32.totalorder %s40, %s41
      %p55 = scmp.eq.s32.totalorder %s33, 1
      %p56 = por %p54, %p55
      %p58 = scmp.ne.s32.totalorder %s41, %s57
      %p59 = scmp.eq.s32.totalorder %s33, 0
      %p60 = por %p58, %p59
      %s61 = ssub.s32 %s27, %s34
      %p62 = scmp.eq.s32.totalorder %s61, 0
      %s64 = sadd.s32 %s63, 1
      %s65 = scalar_select %p62, %s63, %s64
      %p68 = pneg %p62
      %p69 = scmp.eq.s32.totalorder %s27, 1
      %p70 = por %p68, %p69
      %p71 = scmp.ne.s32.totalorder %s63, %s66
      %p72 = scmp.eq.s32.totalorder %s27, 0
      %p73 = por %p71, %p72
      %p74 = scmp.ne.s32.totalorder %s63, %s66
      %p75 = scmp.eq.s32.totalorder %s32, 1
      %p76 = por %p74, %p75
      %p77 = scmp.ne.s32.totalorder %s66, %s67
      %p78 = scmp.eq.s32.totalorder %s32, 0
      %p79 = por %p77, %p78
      %p80 = scmp.ne.s32.totalorder %s66, %s67
      %p81 = scmp.eq.s32.totalorder %s33, 1
      %p82 = por %p80, %p81
      %p84 = scmp.ne.s32.totalorder %s67, %s83
      %p85 = scmp.eq.s32.totalorder %s33, 0
      %p86 = por %p84, %p85
      %s87 = ssub.s32 %s27, %s34
      %p88 = scmp.eq.s32.totalorder %s87, 0
      %s90 = sadd.s32 %s89, 1
      %s91 = scalar_select %p88, %s89, %s90
      %p94 = pneg %p88
      %p95 = scmp.eq.s32.totalorder %s27, 1
      %p96 = por %p94, %p95
      %p97 = scmp.ne.s32.totalorder %s89, %s92
      %p98 = scmp.eq.s32.totalorder %s27, 0
      %p99 = por %p97, %p98
      %p100 = scmp.ne.s32.totalorder %s89, %s92
      %p101 = scmp.eq.s32.totalorder %s32, 1
      %p102 = por %p100, %p101
      %p103 = scmp.ne.s32.totalorder %s92, %s93
      %p104 = scmp.eq.s32.totalorder %s32, 0
      %p105 = por %p103, %p104
      %p106 = scmp.ne.s32.totalorder %s92, %s93
      %p107 = scmp.eq.s32.totalorder %s33, 1
      %p108 = por %p106, %p107
      %p110 = scmp.ne.s32.totalorder %s93, %s109
      %p111 = scmp.eq.s32.totalorder %s33, 0
      %p112 = por %p110, %p111
      %s113 = ssub.s32 %s27, %s34
      %p114 = scmp.eq.s32.totalorder %s113, 0
      %s116 = sadd.s32 %s115, 1
      %s117 = scalar_select %p114, %s115, %s116
      %p120 = pneg %p114
      %p121 = scmp.eq.s32.totalorder %s27, 1
      %p122 = por %p120, %p121
      %p123 = scmp.ne.s32.totalorder %s115, %s118
      %p124 = scmp.eq.s32.totalorder %s27, 0
      %p125 = por %p123, %p124
      %p126 = scmp.ne.s32.totalorder %s115, %s118
      %p127 = scmp.eq.s32.totalorder %s32, 1
      %p128 = por %p126, %p127
      %p129 = scmp.ne.s32.totalorder %s118, %s119
      %p130 = scmp.eq.s32.totalorder %s32, 0
      %p131 = por %p129, %p130
      %p132 = scmp.ne.s32.totalorder %s118, %s119
      %p133 = scmp.eq.s32.totalorder %s33, 1
      %p134 = por %p132, %p133
      %p136 = scmp.ne.s32.totalorder %s119, %s135
      %p137 = scmp.eq.s32.totalorder %s33, 0
      %p138 = por %p136, %p137
      %s140 = sadd.s32 %s139, 1
      %p143 = scmp.eq.s32.totalorder %s27, 1
      %p144 = scmp.ne.s32.totalorder %s139, %s141
      %p145 = scmp.eq.s32.totalorder %s27, 0
      %p146 = por %p144, %p145
      %p147 = scmp.ne.s32.totalorder %s139, %s141
      %p148 = scmp.eq.s32.totalorder %s32, 1
      %p149 = por %p147, %p148
      %p150 = scmp.ne.s32.totalorder %s141, %s142
      %p151 = scmp.eq.s32.totalorder %s32, 0
      %p152 = por %p150, %p151
      %p153 = scmp.ne.s32.totalorder %s141, %s142
      %p154 = scmp.eq.s32.totalorder %s33, 1
      %p155 = por %p153, %p154
      %p157 = scmp.ne.s32.totalorder %s142, %s156
      %p158 = scmp.eq.s32.totalorder %s33, 0
      %p159 = por %p157, %p158
      %s161 = sadd.s32 %s160, 1
      %p164 = scmp.eq.s32.totalorder %s27, 1
      %p165 = scmp.ne.s32.totalorder %s160, %s162
      %p166 = scmp.eq.s32.totalorder %s27, 0
      %p167 = por %p165, %p166
      %p168 = scmp.ne.s32.totalorder %s160, %s162
      %p169 = scmp.eq.s32.totalorder %s32, 1
      %p170 = por %p168, %p169
      %p171 = scmp.ne.s32.totalorder %s162, %s163
      %p172 = scmp.eq.s32.totalorder %s32, 0
      %p173 = por %p171, %p172
      %p174 = scmp.ne.s32.totalorder %s162, %s163
      %p175 = scmp.eq.s32.totalorder %s33, 1
      %p176 = por %p174, %p175
      %p178 = scmp.ne.s32.totalorder %s163, %s177
      %p179 = scmp.eq.s32.totalorder %s33, 0
      %p180 = por %p178, %p179
      %s182 = sadd.s32 %s181, 1
      %p185 = scmp.eq.s32.totalorder %s27, 1
      %p186 = scmp.ne.s32.totalorder %s181, %s183
      %p187 = scmp.eq.s32.totalorder %s27, 0
      %p188 = por %p186, %p187
      %p189 = scmp.ne.s32.totalorder %s181, %s183
      %p190 = scmp.eq.s32.totalorder %s32, 1
      %p191 = por %p189, %p190
      %p192 = scmp.ne.s32.totalorder %s183, %s184
      %p193 = scmp.eq.s32.totalorder %s32, 0
      %p194 = por %p192, %p193
      %p195 = scmp.ne.s32.totalorder %s183, %s184
      %p196 = scmp.eq.s32.totalorder %s33, 1
      %p197 = por %p195, %p196
      %p199 = scmp.ne.s32.totalorder %s184, %s198
      %p200 = scmp.eq.s32.totalorder %s33, 0
      %p201 = por %p199, %p200
      %s203 = sadd.s32 %s202, 1
      %p206 = scmp.eq.s32.totalorder %s27, 1
      %p207 = scmp.ne.s32.totalorder %s202, %s204
      %p208 = scmp.eq.s32.totalorder %s27, 0
      %p209 = por %p207, %p208
      %p210 = scmp.ne.s32.totalorder %s202, %s204
      %p211 = scmp.eq.s32.totalorder %s32, 1
      %p212 = por %p210, %p211
      %p213 = scmp.ne.s32.totalorder %s204, %s205
      %p214 = scmp.eq.s32.totalorder %s32, 0
      %p215 = por %p213, %p214
      %p216 = scmp.ne.s32.totalorder %s204, %s205
      %p217 = scmp.eq.s32.totalorder %s33, 1
      %p218 = por %p216, %p217
      %p220 = scmp.ne.s32.totalorder %s205, %s219
      %p221 = scmp.eq.s32.totalorder %s33, 0
      %p222 = por %p220, %p221
      %s224 = sadd.s32 %s223, 1
      %p227 = scmp.eq.s32.totalorder %s27, 1
      %p228 = scmp.ne.s32.totalorder %s223, %s225
      %p229 = scmp.eq.s32.totalorder %s27, 0
      %p230 = por %p228, %p229
      %p231 = scmp.ne.s32.totalorder %s223, %s225
      %p232 = scmp.eq.s32.totalorder %s32, 1
      %p233 = por %p231, %p232
      %p234 = scmp.ne.s32.totalorder %s225, %s226
      %p235 = scmp.eq.s32.totalorder %s32, 0
      %p236 = por %p234, %p235
      %p237 = scmp.ne.s32.totalorder %s225, %s226
      %p238 = scmp.eq.s32.totalorder %s33, 1
      %p239 = por %p237, %p238
      %p241 = scmp.ne.s32.totalorder %s226, %s240
      %p242 = scmp.eq.s32.totalorder %s33, 0
      %p243 = por %p241, %p242
      %s245 = sadd.s32 %s244, 1
      %p248 = scmp.eq.s32.totalorder %s27, 1
      %p249 = scmp.ne.s32.totalorder %s244, %s246
      %p250 = scmp.eq.s32.totalorder %s27, 0
      %p251 = por %p249, %p250
      %p252 = scmp.ne.s32.totalorder %s244, %s246
      %p253 = scmp.eq.s32.totalorder %s32, 1
      %p254 = por %p252, %p253
      %p255 = scmp.ne.s32.totalorder %s246, %s247
      %p256 = scmp.eq.s32.totalorder %s32, 0
      %p257 = por %p255, %p256
      %p258 = scmp.ne.s32.totalorder %s246, %s247
      %p259 = scmp.eq.s32.totalorder %s33, 1
      %p260 = por %p258, %p259
      %p262 = scmp.ne.s32.totalorder %s247, %s261
      %p263 = scmp.eq.s32.totalorder %s33, 0
      %p264 = por %p262, %p263
      %s266 = sadd.s32 %s265, 1
      %p269 = scmp.eq.s32.totalorder %s27, 1
      %p270 = scmp.ne.s32.totalorder %s265, %s267
      %p271 = scmp.eq.s32.totalorder %s27, 0
      %p272 = por %p270, %p271
      %p273 = scmp.ne.s32.totalorder %s265, %s267
      %p274 = scmp.eq.s32.totalorder %s32, 1
      %p275 = por %p273, %p274
      %p276 = scmp.ne.s32.totalorder %s267, %s268
      %p277 = scmp.eq.s32.totalorder %s32, 0
      %p278 = por %p276, %p277
      %p279 = scmp.ne.s32.totalorder %s267, %s268
      %p280 = scmp.eq.s32.totalorder %s33, 1
      %p281 = por %p279, %p280
      %p283 = scmp.ne.s32.totalorder %s268, %s282
      %p284 = scmp.eq.s32.totalorder %s33, 0
      %p285 = por %p283, %p284
      %s287 = sadd.s32 %s286, 1
      %p290 = scmp.eq.s32.totalorder %s27, 1
      %p291 = scmp.ne.s32.totalorder %s286, %s288
      %p292 = scmp.eq.s32.totalorder %s27, 0
      %p293 = por %p291, %p292
      %p294 = scmp.ne.s32.totalorder %s286, %s288
      %p295 = scmp.eq.s32.totalorder %s32, 1
      %p296 = por %p294, %p295
      %p297 = scmp.ne.s32.totalorder %s288, %s289
      %p298 = scmp.eq.s32.totalorder %s32, 0
      %p299 = por %p297, %p298
      %p300 = scmp.ne.s32.totalorder %s288, %s289
      %p301 = scmp.eq.s32.totalorder %s33, 1
      %p302 = por %p300, %p301
      %p304 = scmp.ne.s32.totalorder %s289, %s303
      %p305 = scmp.eq.s32.totalorder %s33, 0
      %p306 = por %p304, %p305
      %s308 = sadd.s32 %s307, 1
      %p311 = scmp.eq.s32.totalorder %s27, 1
      %p312 = scmp.ne.s32.totalorder %s307, %s309
      %p313 = scmp.eq.s32.totalorder %s27, 0
      %p314 = por %p312, %p313
      %p315 = scmp.ne.s32.totalorder %s307, %s309
      %p316 = scmp.eq.s32.totalorder %s32, 1
      %p317 = por %p315, %p316
      %p318 = scmp.ne.s32.totalorder %s309, %s310
      %p319 = scmp.eq.s32.totalorder %s32, 0
      %p320 = por %p318, %p319
      %p321 = scmp.ne.s32.totalorder %s309, %s310
      %p322 = scmp.eq.s32.totalorder %s33, 1
      %p323 = por %p321, %p322
      %p325 = scmp.ne.s32.totalorder %s310, %s324
      %p326 = scmp.eq.s32.totalorder %s33, 0
      %p327 = por %p325, %p326
      %s329 = sadd.s32 %s328, 1
      %p332 = scmp.eq.s32.totalorder %s27, 1
      %p333 = scmp.ne.s32.totalorder %s328, %s330
      %p334 = scmp.eq.s32.totalorder %s27, 0
      %p335 = por %p333, %p334
      %p336 = scmp.ne.s32.totalorder %s328, %s330
      %p337 = scmp.eq.s32.totalorder %s32, 1
      %p338 = por %p336, %p337
      %p339 = scmp.ne.s32.totalorder %s330, %s331
      %p340 = scmp.eq.s32.totalorder %s32, 0
      %p341 = por %p339, %p340
      %p342 = scmp.ne.s32.totalorder %s330, %s331
      %p343 = scmp.eq.s32.totalorder %s33, 1
      %p344 = por %p342, %p343
      %p346 = scmp.ne.s32.totalorder %s331, %s345
      %p347 = scmp.eq.s32.totalorder %s33, 0
      %p348 = por %p346, %p347
      %s350 = sadd.s32 %s349, 1
      %p353 = scmp.eq.s32.totalorder %s27, 1
      %p354 = scmp.ne.s32.totalorder %s349, %s351
      %p355 = scmp.eq.s32.totalorder %s27, 0
      %p356 = por %p354, %p355
      %p357 = scmp.ne.s32.totalorder %s349, %s351
      %p358 = scmp.eq.s32.totalorder %s32, 1
      %p359 = por %p357, %p358
      %p360 = scmp.ne.s32.totalorder %s351, %s352
      %p361 = scmp.eq.s32.totalorder %s32, 0
      %p362 = por %p360, %p361
      %p363 = scmp.ne.s32.totalorder %s351, %s352
      %p364 = scmp.eq.s32.totalorder %s33, 1
      %p365 = por %p363, %p364
      %p367 = scmp.ne.s32.totalorder %s352, %s366
      %p368 = scmp.eq.s32.totalorder %s33, 0
      %p369 = por %p367, %p368
      %s371 = sadd.s32 %s370, 1
      %p374 = scmp.eq.s32.totalorder %s27, 1
      %p375 = scmp.ne.s32.totalorder %s370, %s372
      %p376 = scmp.eq.s32.totalorder %s27, 0
      %p377 = por %p375, %p376
      %p378 = scmp.ne.s32.totalorder %s370, %s372
      %p379 = scmp.eq.s32.totalorder %s32, 1
      %p380 = por %p378, %p379
      %p381 = scmp.ne.s32.totalorder %s372, %s373
      %p382 = scmp.eq.s32.totalorder %s32, 0
      %p383 = por %p381, %p382
      %p384 = scmp.ne.s32.totalorder %s372, %s373
      %p385 = scmp.eq.s32.totalorder %s33, 1
      %p386 = por %p384, %p385
      %p388 = scmp.ne.s32.totalorder %s373, %s387
      %p389 = scmp.eq.s32.totalorder %s33, 0
      %p390 = por %p388, %p389
      %s392 = sadd.s32 %s391, 1
      %p395 = scmp.eq.s32.totalorder %s27, 1
      %p396 = scmp.ne.s32.totalorder %s391, %s393
      %p397 = scmp.eq.s32.totalorder %s27, 0
      %p398 = por %p396, %p397
      %p399 = scmp.ne.s32.totalorder %s391, %s393
      %p400 = scmp.eq.s32.totalorder %s32, 1
      %p401 = por %p399, %p400
      %p402 = scmp.ne.s32.totalorder %s393, %s394
      %p403 = scmp.eq.s32.totalorder %s32, 0
      %p404 = por %p402, %p403
      %p405 = scmp.ne.s32.totalorder %s393, %s394
      %p406 = scmp.eq.s32.totalorder %s33, 1
      %p407 = por %p405, %p406
      %p409 = scmp.ne.s32.totalorder %s394, %s408
      %p410 = scmp.eq.s32.totalorder %s33, 0
      %p411 = por %p409, %p410
      %s413 = sadd.s32 %s412, 1
      %p416 = scmp.eq.s32.totalorder %s27, 1
      %p417 = scmp.ne.s32.totalorder %s412, %s414
      %p418 = scmp.eq.s32.totalorder %s27, 0
      %p419 = por %p417, %p418
      %p420 = scmp.ne.s32.totalorder %s412, %s414
      %p421 = scmp.eq.s32.totalorder %s32, 1
      %p422 = por %p420, %p421
      %p423 = scmp.ne.s32.totalorder %s414, %s415
      %p424 = scmp.eq.s32.totalorder %s32, 0
      %p425 = por %p423, %p424
      %p426 = scmp.ne.s32.totalorder %s414, %s415
      %p427 = scmp.eq.s32.totalorder %s33, 1
      %p428 = por %p426, %p427
      %p430 = scmp.ne.s32.totalorder %s415, %s429
      %p431 = scmp.eq.s32.totalorder %s33, 0
      %p432 = por %p430, %p431
      %s433 = ssub.s32 %s27, %s34
      %p434 = scmp.eq.s32.totalorder %s433, 0
      %s436 = sadd.s32 %s435, 1
      %s437 = scalar_select %p434, %s435, %s436
      %p440 = pneg %p434
      %p441 = scmp.eq.s32.totalorder %s27, 1
      %p442 = por %p440, %p441
      %p443 = scmp.ne.s32.totalorder %s435, %s438
      %p444 = scmp.eq.s32.totalorder %s27, 0
      %p445 = por %p443, %p444
      %p446 = scmp.ne.s32.totalorder %s435, %s438
      %p447 = scmp.eq.s32.totalorder %s32, 1
      %p448 = por %p446, %p447
      %p449 = scmp.ne.s32.totalorder %s438, %s439
      %p450 = scmp.eq.s32.totalorder %s32, 0
      %p451 = por %p449, %p450
      %p452 = scmp.ne.s32.totalorder %s438, %s439
      %p453 = scmp.eq.s32.totalorder %s33, 1
      %p454 = por %p452, %p453
      %p456 = scmp.ne.s32.totalorder %s439, %s455
      %p457 = scmp.eq.s32.totalorder %s33, 0
      %p458 = por %p456, %p457
      %p459 = scmp.le.s32.totalorder 1, %s27
      %p460 = scmp.lt.s32.totalorder %s27, 3
      %p461 = pnand %p459, %p460
      %p462 = pneg %p461
      // Predicated region
      $region9: #{bert_text_encoder_forward.1} parent=5 // pred_check
        _
      $region10: #{bert_text_encoder_forward.1} parent=5 // pred_check_branch
        %464 = sbr.rel (%p461) target = $region12
      $region11: #{bert_text_encoder_forward.1} parent=5 // pred_region
        %s465 = ssub.s32 %s27, 1
        // Predicated region
        $region13: #{bert_text_encoder_forward.1} parent=11 // pred_check
          %p466 = pneg %p152
        $region14: #{bert_text_encoder_forward.1} parent=11 // pred_check_branch
          %468 = sbr.rel (%p466) target = $region16
        $region15: #{bert_text_encoder_forward.1} parent=11 // pred_region
          _
        $region16: #{bert_text_encoder_forward.1} parent=11 // pred_fallthru
          _
        // Predicated region
        $region17: #{bert_text_encoder_forward.1} parent=11 // pred_check
          %p469 = pneg %p173
        $region18: #{bert_text_encoder_forward.1} parent=11 // pred_check_branch
          %471 = sbr.rel (%p469) target = $region20
        $region19: #{bert_text_encoder_forward.1} parent=11 // pred_region
          _
        $region20: #{bert_text_encoder_forward.1} parent=11 // pred_fallthru
          _
        // Predicated region
        $region21: #{bert_text_encoder_forward.1} parent=11 // pred_check
          %p472 = pneg %p194
        $region22: #{bert_text_encoder_forward.1} parent=11 // pred_check_branch
          %474 = sbr.rel (%p472) target = $region24
        $region23: #{bert_text_encoder_forward.1} parent=11 // pred_region
          _
        $region24: #{bert_text_encoder_forward.1} parent=11 // pred_fallthru
          _
        // Predicated region
        $region25: #{bert_text_encoder_forward.1} parent=11 // pred_check
          %p475 = pneg %p215
        $region26: #{bert_text_encoder_forward.1} parent=11 // pred_check_branch
          %477 = sbr.rel (%p475) target = $region28
        $region27: #{bert_text_encoder_forward.1} parent=11 // pred_region
          _
        $region28: #{bert_text_encoder_forward.1} parent=11 // pred_fallthru
          _
        // Predicated region
        $region29: #{bert_text_encoder_forward.1} parent=11 // pred_check
          %p478 = pneg %p236
        $region30: #{bert_text_encoder_forward.1} parent=11 // pred_check_branch
          %480 = sbr.rel (%p478) target = $region32
        $region31: #{bert_text_encoder_forward.1} parent=11 // pred_region
          _
        $region32: #{bert_text_encoder_forward.1} parent=11 // pred_fallthru
          _
        // Predicated region
        $region33: #{bert_text_encoder_forward.1} parent=11 // pred_check
          %p481 = pneg %p257
        $region34: #{bert_text_encoder_forward.1} parent=11 // pred_check_branch
          %483 = sbr.rel (%p481) target = $region36
        $region35: #{bert_text_encoder_forward.1} parent=11 // pred_region
          _
        $region36: #{bert_text_encoder_forward.1} parent=11 // pred_fallthru
          _
        // Predicated region
        $region37: #{bert_text_encoder_forward.1} parent=11 // pred_check
          %p484 = pneg %p278
        $region38: #{bert_text_encoder_forward.1} parent=11 // pred_check_branch
          %486 = sbr.rel (%p484) target = $region40
        $region39: #{bert_text_encoder_forward.1} parent=11 // pred_region
          _
        $region40: #{bert_text_encoder_forward.1} parent=11 // pred_fallthru
          _
        // Predicated region
        $region41: #{bert_text_encoder_forward.1} parent=11 // pred_check
          %p487 = pneg %p299
        $region42: #{bert_text_encoder_forward.1} parent=11 // pred_check_branch
          %489 = sbr.rel (%p487) target = $region44
        $region43: #{bert_text_encoder_forward.1} parent=11 // pred_region
          _
        $region44: #{bert_text_encoder_forward.1} parent=11 // pred_fallthru
          _
        // Predicated region
        $region45: #{bert_text_encoder_forward.1} parent=11 // pred_check
          %p490 = pneg %p320
        $region46: #{bert_text_encoder_forward.1} parent=11 // pred_check_branch
          %492 = sbr.rel (%p490) target = $region48
        $region47: #{bert_text_encoder_forward.1} parent=11 // pred_region
          _
        $region48: #{bert_text_encoder_forward.1} parent=11 // pred_fallthru
          _
        // Predicated region
        $region49: #{bert_text_encoder_forward.1} parent=11 // pred_check
          %p493 = pneg %p341
        $region50: #{bert_text_encoder_forward.1} parent=11 // pred_check_branch
          %495 = sbr.rel (%p493) target = $region52
        $region51: #{bert_text_encoder_forward.1} parent=11 // pred_region
          _
        $region52: #{bert_text_encoder_forward.1} parent=11 // pred_fallthru
          _
        // Predicated region
        $region53: #{bert_text_encoder_forward.1} parent=11 // pred_check
          %p496 = pneg %p362
        $region54: #{bert_text_encoder_forward.1} parent=11 // pred_check_branch
          %498 = sbr.rel (%p496) target = $region56
        $region55: #{bert_text_encoder_forward.1} parent=11 // pred_region
          _
        $region56: #{bert_text_encoder_forward.1} parent=11 // pred_fallthru
          _
        // Predicated region
        $region57: #{bert_text_encoder_forward.1} parent=11 // pred_check
          %p499 = pneg %p383
        $region58: #{bert_text_encoder_forward.1} parent=11 // pred_check_branch
          %501 = sbr.rel (%p499) target = $region60
        $region59: #{bert_text_encoder_forward.1} parent=11 // pred_region
          _
        $region60: #{bert_text_encoder_forward.1} parent=11 // pred_fallthru
          _
        // Predicated region
        $region61: #{bert_text_encoder_forward.1} parent=11 // pred_check
          %p502 = pneg %p404
        $region62: #{bert_text_encoder_forward.1} parent=11 // pred_check_branch
          %504 = sbr.rel (%p502) target = $region64
        $region63: #{bert_text_encoder_forward.1} parent=11 // pred_region
          _
        $region64: #{bert_text_encoder_forward.1} parent=11 // pred_fallthru
          _
        // Predicated region
        $region65: #{bert_text_encoder_forward.1} parent=11 // pred_check
          %p505 = pneg %p425
        $region66: #{bert_text_encoder_forward.1} parent=11 // pred_check_branch
          %507 = sbr.rel (%p505) target = $region68
        $region67: #{bert_text_encoder_forward.1} parent=11 // pred_region
          _
        $region68: #{bert_text_encoder_forward.1} parent=11 // pred_fallthru
          _
      $region12: #{bert_text_encoder_forward.1} parent=5 // pred_fallthru
        _
      %p508 = scmp.lt.s32.totalorder %s27, 2
      // Predicated region
      $region69: #{bert_text_encoder_forward.1} parent=5 // pred_check
        %p509 = pneg %p508
      $region70: #{bert_text_encoder_forward.1} parent=5 // pred_check_branch
        %511 = sbr.rel (%p509) target = $region72
      $region71: #{bert_text_encoder_forward.1} parent=5 // pred_region
        // Predicated region
        $region73: #{bert_text_encoder_forward.1} parent=71 // pred_check
          %p512 = pneg %p47
        $region74: #{bert_text_encoder_forward.1} parent=71 // pred_check_branch
          %514 = sbr.rel (%p512) target = $region76
        $region75: #{bert_text_encoder_forward.1} parent=71 // pred_region
          %p515 = scmp.lt.s32.totalorder %s27, 1
          %s516 = scalar_select %p515, %s27, 1
          %s517 = smul.addr %s516, 8
          %s518 = scalar_lea.vmem %s0, %s517
        $region76: #{bert_text_encoder_forward.1} parent=71 // pred_fallthru
          _
        // Predicated region
        $region77: #{bert_text_encoder_forward.1} parent=71 // pred_check
          %p519 = pneg %p73
        $region78: #{bert_text_encoder_forward.1} parent=71 // pred_check_branch
          %521 = sbr.rel (%p519) target = $region80
        $region79: #{bert_text_encoder_forward.1} parent=71 // pred_region
          %p522 = scmp.lt.s32.totalorder %s27, 1
          %s523 = scalar_select %p522, %s27, 1
          %s524 = smul.addr %s523, 8
          %s525 = scalar_lea.vmem %s1, %s524
        $region80: #{bert_text_encoder_forward.1} parent=71 // pred_fallthru
          _
        // Predicated region
        $region81: #{bert_text_encoder_forward.1} parent=71 // pred_check
          %p526 = pneg %p99
        $region82: #{bert_text_encoder_forward.1} parent=71 // pred_check_branch
          %528 = sbr.rel (%p526) target = $region84
        $region83: #{bert_text_encoder_forward.1} parent=71 // pred_region
          %p529 = scmp.lt.s32.totalorder %s27, 1
          %s530 = scalar_select %p529, %s27, 1
          %s531 = smul.addr %s530, 8
          %s532 = scalar_lea.vmem %s2, %s531
        $region84: #{bert_text_encoder_forward.1} parent=71 // pred_fallthru
          _
        // Predicated region
        $region85: #{bert_text_encoder_forward.1} parent=71 // pred_check
          %p533 = pneg %p125
        $region86: #{bert_text_encoder_forward.1} parent=71 // pred_check_branch
          %535 = sbr.rel (%p533) target = $region88
        $region87: #{bert_text_encoder_forward.1} parent=71 // pred_region
          %p536 = scmp.lt.s32.totalorder %s27, 1
          %s537 = scalar_select %p536, %s27, 1
          %s538 = scalar_lea.vmem %s3, %s537
        $region88: #{bert_text_encoder_forward.1} parent=71 // pred_fallthru
          _
      $region72: #{bert_text_encoder_forward.1} parent=5 // pred_fallthru
        _
      %p539 = scmp.le.s32.totalorder 1, %s27
      %p540 = scmp.lt.s32.totalorder %s27, 3
      %p541 = pnand %p539, %p540
      %p542 = pneg %p541
      // Predicated region
      $region89: #{bert_text_encoder_forward.1} parent=5 // pred_check
        _
      $region90: #{bert_text_encoder_forward.1} parent=5 // pred_check_branch
        %544 = sbr.rel (%p541) target = $region92
      $region91: #{bert_text_encoder_forward.1} parent=5 // pred_region
        %s545 = ssub.s32 %s27, 1
        %p546 = scmp.lt.s32.totalorder %s32, 1
        %s547 = scalar_select %p546, %s32, 1
        %s548 = smul.addr %s547, 8
        %s549 = scalar_lea.vmem %s0, %s548
        %p550 = pneg %p53
        %p551 = pneg %p50
        %p552 = scmp.lt.s32.totalorder %s32, 1
        %s553 = scalar_select %p552, %s32, 1
        %s554 = smul.addr %s553, 8
        %s555 = scalar_lea.vmem %s1, %s554
        %p556 = pneg %p79
        %p557 = pneg %p76
        %p558 = scmp.lt.s32.totalorder %s32, 1
        %s559 = scalar_select %p558, %s32, 1
        %s560 = smul.addr %s559, 8
        %s561 = scalar_lea.vmem %s2, %s560
        %p562 = pneg %p105
        %p563 = pneg %p102
        %p564 = scmp.lt.s32.totalorder %s32, 1
        %s565 = scalar_select %p564, %s32, 1
        %s566 = scalar_lea.vmem %s3, %s565
        %p567 = pneg %p131
        %p568 = pneg %p128
        %p569 = pneg %p152
        %p570 = pneg %p149
        %p571 = pneg %p173
        %p572 = pneg %p170
        %p573 = pneg %p194
        %p574 = pneg %p191
        %p575 = pneg %p215
        %p576 = pneg %p212
        %p577 = pneg %p236
        %p578 = pneg %p233
        %p579 = pneg %p257
        %p580 = pneg %p254
        %p581 = pneg %p278
        %p582 = pneg %p275
        %p583 = pneg %p299
        %p584 = pneg %p296
        %p585 = pneg %p320
        %p586 = pneg %p317
        %p587 = pneg %p341
        %p588 = pneg %p338
        %p589 = pneg %p362
        %p590 = pneg %p359
        %p591 = pneg %p383
        %p592 = pneg %p380
        %p593 = pneg %p404
        %p594 = pneg %p401
        %p595 = pneg %p425
        %p596 = pneg %p422
        %p597 = pneg %p451
        %p598 = pneg %p448
        %s599 = sand.u32 %s438, 1
        %s600 = scalar_lea.sflag [#allocation3], %s599
        %s601 = sand.u32 %s438, 1
        %s602 = smul.addr %s601, 8
        %s603 = scalar_lea.vmem [#allocation2], %s602
        %p604 = scmp.lt.s32.totalorder %s32, 1
        %s605 = scalar_select %p604, %s32, 1
        %s606 = smul.addr %s605, 8
        %s607 = scalar_lea.vmem %s0, %s606
        %p608 = scmp.lt.s32.totalorder %s32, 1
        %s609 = scalar_select %p608, %s32, 1
        %s610 = smul.addr %s609, 8
        %s611 = scalar_lea.vmem %s1, %s610
        %p612 = scmp.lt.s32.totalorder %s32, 1
        %s613 = scalar_select %p612, %s32, 1
        %s614 = smul.addr %s613, 8
        %s615 = scalar_lea.vmem %s2, %s614
        %p616 = scmp.lt.s32.totalorder %s32, 1
        %s617 = scalar_select %p616, %s32, 1
        %s618 = scalar_lea.vmem %s3, %s617
        %v620 = vld [vmem:[%s607] sm:$0xff]
        %v621 = vld [vmem:[%s611] sm:$0xff]
        %v622 = vadd.f32 %v620, %v621
        %v623 = vld [vmem:[%s615] sm:$0xff]
        %v624 = vadd.f32 %v622, %v623
        %v625 = vld [vmem:[%s4] sm:$0x1]
        %v626 = vld [vmem:[%s5] sm:$0x1]
        %vm627 = vcmask 261120
        %v628 = vsel %vm627, %v624, 0.0
        %629 = vadd.xlane.f32.xlu0 %v628
        %v630 = vpop.xlane.xlu0 %629
        %v631 = vrcp.pop 32.0
        %v632 = vmul.f32 %v630, %v631
        %v633 = vsub.f32 %v624, %v632
        %v634 = vmul.f32 %v633, %v633
        %v635 = vsel %vm627, %v634, 0.0
        %636 = vadd.xlane.f32.xlu0 %v635
        %v637 = vpop.xlane.xlu0 %636
        %v638 = vmul.f32 %v637, %v631
        %v639 = vadd.f32 %v638, 1e-12
        %v640 = vrsqrt.pop %v639
        %v641 = vmul.f32 %v633, %v640
        %v643 = vlaneseq
        %v644 = vshrl.u32 %v643, 7
        %v645 = vsub.s32 0, %v644
        %v646 = vrot.slane %v625, %v645
        %v648 = vmul.f32 %v641, %v646
        %v650 = vlaneseq
        %v651 = vshrl.u32 %v650, 7
        %v652 = vsub.s32 0, %v651
        %v653 = vrot.slane %v626, %v652
        %v655 = vadd.f32 %v648, %v653
        %v656 = vld [vmem:[%s618] sm:$0x1]
        %v657 = vpack.c.bf16 %v655, %v655
        %v658 = vld [vmem:[%s6] sm:$0xf]
        %v659 = vld [vmem:[%s6 + $0x4] sm:$0xf]
        %v660 = vld [vmem:[%s6 + $0x8] sm:$0xf]
        %v661 = vld [vmem:[%s6 + $0xc] sm:$0xf]
        %v662 = vld [vmem:[%s7] sm:$0x1]
        %v664 = vlaneseq
        %v665 = vshrl.u32 %v664, 7
        %v666 = vsub.s32 0, %v665
        %v667 = vrot.slane %v662, %v666
        %v673 = vunpack.c.l.b16 %v658
        %v674 = vunpack.c.l.b16 %v659
        %v675 = vunpack.c.l.b16 %v660
        %v676 = vunpack.c.l.b16 %v661
        %v677 = vpack.c.b16 %v674, %v673
        %v678 = vpack.c.b16 %v676, %v675
        %v682 = vsel %vm627, %v657, 0
        %684 = vmatprep.subr.bf16.mxu0 0
        %685 = vmatpush1.bf16.msra.mxu0 0
        %686 = vmatprep.subr.bf16.mxu0 0
        %687 = vmatpush1.bf16.msra.mxu0 0
        %688 = vmatprep.subr.bf16.mxu0 0
        %689 = vmatpush1.bf16.msra.mxu0 0
        %690 = vmatprep.subr.bf16.mxu0 0
        %691 = vmatpush1.bf16.msra.mxu0 0
        %692 = vmatprep.subr.bf16.mxu0 0
        %693 = vmatpush1.bf16.msra.mxu0 0
        %694 = vmatprep.subr.bf16.mxu0 0
        %695 = vmatpush1.bf16.msra.mxu0 0
        %696 = vmatprep.subr.bf16.mxu0 0
        %697 = vmatpush1.bf16.msra.mxu0 %v678
        %698 = vmatprep.subr.bf16.mxu0 0
        %699 = vmatpush1.bf16.msra.mxu0 %v677
        %700 = vmatprep.subr.bf16.mxu0 0
        %701 = vmatpush2.bf16.msra.mxu0 0
        %702 = vmatprep.subr.bf16.mxu0 0
        %703 = vmatpush2.bf16.msra.mxu0 0
        %704 = vmatprep.subr.bf16.mxu0 0
        %705 = vmatpush2.bf16.msra.mxu0 0
        %706 = vmatprep.subr.bf16.mxu0 0
        %707 = vmatpush2.bf16.msra.mxu0 0
        %708 = vmatprep.subr.bf16.mxu0 0
        %709 = vmatpush2.bf16.msra.mxu0 0
        %710 = vmatprep.subr.bf16.mxu0 0
        %711 = vmatpush2.bf16.msra.mxu0 0
        %712 = vmatprep.subr.bf16.mxu0 0
        %713 = vmatpush2.bf16.msra.mxu0 0
        %714 = vmatprep.subr.bf16.mxu0 0
        %715 = vmatpush2.bf16.msra.mxu0 0
        %716 = vmatprep.mubr.bf16.mxu0 0
        %717 = vmatmul.mubr.bf16.gmra.mxu0 %v682
        %v718 = vpop.f32.mrf.mxu0
        %v719 = vadd.f32 %v667, %v718
        %v720 = vpop.f32.mrf.mxu0
        %v721 = vpop.f32.mrf.mxu0
        %v722 = vpop.f32.mrf.mxu0
        %723 = vdwg.mxu0
        %v724 = vmul.f32 %v719, 0.25
        %v725 = vpack.c.bf16 %v724, %v724
        %v726 = vpack.c.bf16 %v719, %v719
        %v728 = vlaneseq
        %v729 = vshrl.u32 %v728, 7
        %v730 = vsub.s32 0, %v729
        %v731 = vrot.slane %v656, %v730
        %734 = vrot.lane.b32.xlu0 %v726, 96
        %v735 = vpop.permute.xlu0 %734
        %vm736 = vcmask 130048
        %v738 = vsel %vm736, %v725, 0
        %v741 = vsel %vm736, %v735, 0
        %743 = vmatprep.subr.bf16.mxu0 0
        %744 = vmatpush1.bf16.xpose.msra.mxu0 0
        %745 = vmatprep.subr.bf16.mxu0 0
        %746 = vmatpush1.bf16.xpose.msra.mxu0 0
        %747 = vmatprep.subr.bf16.mxu0 0
        %748 = vmatpush1.bf16.xpose.msra.mxu0 0
        %749 = vmatprep.subr.bf16.mxu0 0
        %750 = vmatpush1.bf16.xpose.msra.mxu0 0
        %751 = vmatprep.subr.bf16.mxu0 0
        %752 = vmatpush1.bf16.xpose.msra.mxu0 0
        %753 = vmatprep.subr.bf16.mxu0 0
        %754 = vmatpush1.bf16.xpose.msra.mxu0 0
        %755 = vmatprep.subr.bf16.mxu0 0
        %756 = vmatpush1.bf16.xpose.msra.mxu0 0
        %757 = vmatprep.subr.bf16.mxu0 0
        %758 = vmatpush1.bf16.xpose.msra.mxu0 %v741
        %759 = vmatprep.subr.bf16.mxu0 0
        %760 = vmatpush2.bf16.xpose.msra.mxu0 0
        %761 = vmatprep.subr.bf16.mxu0 0
        %762 = vmatpush2.bf16.xpose.msra.mxu0 0
        %763 = vmatprep.subr.bf16.mxu0 0
        %764 = vmatpush2.bf16.xpose.msra.mxu0 0
        %765 = vmatprep.subr.bf16.mxu0 0
        %766 = vmatpush2.bf16.xpose.msra.mxu0 0
        %767 = vmatprep.subr.bf16.mxu0 0
        %768 = vmatpush2.bf16.xpose.msra.mxu0 0
        %769 = vmatprep.subr.bf16.mxu0 0
        %770 = vmatpush2.bf16.xpose.msra.mxu0 0
        %771 = vmatprep.subr.bf16.mxu0 0
        %772 = vmatpush2.bf16.xpose.msra.mxu0 0
        %773 = vmatprep.subr.bf16.mxu0 0
        %774 = vmatpush2.bf16.xpose.msra.mxu0 0
        %775 = vmatprep.mubr.bf16.mxu0 0
        %776 = vmatmul.mubr.bf16.gmra.mxu0 %v738
        %v777 = vpop.f32.mrf.mxu0
        %v778 = vadd.f32 %v731, %v777
        %v779 = vpop.f32.mrf.mxu0
        %v780 = vpop.f32.mrf.mxu0
        %v781 = vpop.f32.mrf.mxu0
        %782 = vdwg.mxu0
        %vm783 = vcmask 64512
        %v784 = vsel %vm783, %v778, -inf
        %785 = vmax.xlane.f32.xlu0 %v784
        %v786 = vpop.xlane.xlu0 %785
        %v787 = vsub.f32 %v778, %v786
        %v788 = vmul.f32 %v787, 1.442695
        %v789 = vpow.pop %v788
        %v790 = vsel %vm783, %v789, 0.0
        %791 = vadd.xlane.f32.xlu0 %v790
        %v792 = vpop.xlane.xlu0 %791
        %v793 = vrcp.pop %v792
        %v794 = vmul.f32 %v789, %v793
        %v795 = vpack.c.bf16 %v794, %v794
        %796 = vrot.lane.b32.xlu0 %v726, 64
        %v797 = vpop.permute.xlu0 %796
        %v799 = vsel %vm783, %v795, 0
        %vm801 = vcmask 1043456
        %v803 = vsel %vm801, %v797, 0
        %805 = vmatprep.subr.bf16.mxu0 0
        %806 = vmatpush1.bf16.msra.mxu0 0
        %807 = vmatprep.subr.bf16.mxu0 0
        %808 = vmatpush1.bf16.msra.mxu0 0
        %809 = vmatprep.subr.bf16.mxu0 0
        %810 = vmatpush1.bf16.msra.mxu0 0
        %811 = vmatprep.subr.bf16.mxu0 0
        %812 = vmatpush1.bf16.msra.mxu0 0
        %813 = vmatprep.subr.bf16.mxu0 0
        %814 = vmatpush1.bf16.msra.mxu0 0
        %815 = vmatprep.subr.bf16.mxu0 0
        %816 = vmatpush1.bf16.msra.mxu0 0
        %817 = vmatprep.subr.bf16.mxu0 0
        %818 = vmatpush1.bf16.msra.mxu0 0
        %819 = vmatprep.subr.bf16.mxu0 0
        %820 = vmatpush1.bf16.msra.mxu0 %v803
        %821 = vmatprep.subr.bf16.mxu0 0
        %822 = vmatpush2.bf16.msra.mxu0 0
        %823 = vmatprep.subr.bf16.mxu0 0
        %824 = vmatpush2.bf16.msra.mxu0 0
        %825 = vmatprep.subr.bf16.mxu0 0
        %826 = vmatpush2.bf16.msra.mxu0 0
        %827 = vmatprep.subr.bf16.mxu0 0
        %828 = vmatpush2.bf16.msra.mxu0 0
        %829 = vmatprep.subr.bf16.mxu0 0
        %830 = vmatpush2.bf16.msra.mxu0 0
        %831 = vmatprep.subr.bf16.mxu0 0
        %832 = vmatpush2.bf16.msra.mxu0 0
        %833 = vmatprep.subr.bf16.mxu0 0
        %834 = vmatpush2.bf16.msra.mxu0 0
        %835 = vmatprep.subr.bf16.mxu0 0
        %836 = vmatpush2.bf16.msra.mxu0 0
        %837 = vmatprep.mubr.bf16.mxu0 0
        %838 = vmatmul.mubr.bf16.gmra.mxu0 %v799
        %v839 = vpop.f32.mrf.mxu0
        %v840 = vadd.f32 0.0, %v839
        %v841 = vpop.f32.mrf.mxu0
        %v842 = vpop.f32.mrf.mxu0
        %v843 = vpop.f32.mrf.mxu0
        %844 = vdwg.mxu0
        %846 = vrot.lane.b32.xlu0 %v725, 112
        %v847 = vpop.permute.xlu0 %846
        %848 = vrot.lane.b32.xlu0 %v726, 80
        %v849 = vpop.permute.xlu0 %848
        %v851 = vsel %vm736, %v847, 0
        %v854 = vsel %vm736, %v849, 0
        %856 = vmatprep.subr.bf16.mxu0 0
        %857 = vmatpush1.bf16.xpose.msra.mxu0 0
        %858 = vmatprep.subr.bf16.mxu0 0
        %859 = vmatpush1.bf16.xpose.msra.mxu0 0
        %860 = vmatprep.subr.bf16.mxu0 0
        %861 = vmatpush1.bf16.xpose.msra.mxu0 0
        %862 = vmatprep.subr.bf16.mxu0 0
        %863 = vmatpush1.bf16.xpose.msra.mxu0 0
        %864 = vmatprep.subr.bf16.mxu0 0
        %865 = vmatpush1.bf16.xpose.msra.mxu0 0
        %866 = vmatprep.subr.bf16.mxu0 0
        %867 = vmatpush1.bf16.xpose.msra.mxu0 0
        %868 = vmatprep.subr.bf16.mxu0 0
        %869 = vmatpush1.bf16.xpose.msra.mxu0 0
        %870 = vmatprep.subr.bf16.mxu0 0
        %871 = vmatpush1.bf16.xpose.msra.mxu0 %v854
        %872 = vmatprep.subr.bf16.mxu0 0
        %873 = vmatpush2.bf16.xpose.msra.mxu0 0
        %874 = vmatprep.subr.bf16.mxu0 0
        %875 = vmatpush2.bf16.xpose.msra.mxu0 0
        %876 = vmatprep.subr.bf16.mxu0 0
        %877 = vmatpush2.bf16.xpose.msra.mxu0 0
        %878 = vmatprep.subr.bf16.mxu0 0
        %879 = vmatpush2.bf16.xpose.msra.mxu0 0
        %880 = vmatprep.subr.bf16.mxu0 0
        %881 = vmatpush2.bf16.xpose.msra.mxu0 0
        %882 = vmatprep.subr.bf16.mxu0 0
        %883 = vmatpush2.bf16.xpose.msra.mxu0 0
        %884 = vmatprep.subr.bf16.mxu0 0
        %885 = vmatpush2.bf16.xpose.msra.mxu0 0
        %886 = vmatprep.subr.bf16.mxu0 0
        %887 = vmatpush2.bf16.xpose.msra.mxu0 0
        %888 = vmatprep.mubr.bf16.mxu0 0
        %889 = vmatmul.mubr.bf16.gmra.mxu0 %v851
        %v890 = vpop.f32.mrf.mxu0
        %v891 = vadd.f32 %v731, %v890
        %v892 = vpop.f32.mrf.mxu0
        %v893 = vpop.f32.mrf.mxu0
        %v894 = vpop.f32.mrf.mxu0
        %895 = vdwg.mxu0
        %v896 = vsel %vm783, %v891, -inf
        %897 = vmax.xlane.f32.xlu0 %v896
        %v898 = vpop.xlane.xlu0 %897
        %v899 = vsub.f32 %v891, %v898
        %v900 = vmul.f32 %v899, 1.442695
        %v901 = vpow.pop %v900
        %v902 = vsel %vm783, %v901, 0.0
        %903 = vadd.xlane.f32.xlu0 %v902
        %v904 = vpop.xlane.xlu0 %903
        %v905 = vrcp.pop %v904
        %v906 = vmul.f32 %v901, %v905
        %v907 = vpack.c.bf16 %v906, %v906
        %908 = vrot.lane.b32.xlu0 %v726, 48
        %v909 = vpop.permute.xlu0 %908
        %v911 = vsel %vm783, %v907, 0
        %v914 = vsel %vm801, %v909, 0
        %916 = vmatprep.subr.bf16.mxu0 0
        %917 = vmatpush1.bf16.msra.mxu0 0
        %918 = vmatprep.subr.bf16.mxu0 0
        %919 = vmatpush1.bf16.msra.mxu0 0
        %920 = vmatprep.subr.bf16.mxu0 0
        %921 = vmatpush1.bf16.msra.mxu0 0
        %922 = vmatprep.subr.bf16.mxu0 0
        %923 = vmatpush1.bf16.msra.mxu0 0
        %924 = vmatprep.subr.bf16.mxu0 0
        %925 = vmatpush1.bf16.msra.mxu0 0
        %926 = vmatprep.subr.bf16.mxu0 0
        %927 = vmatpush1.bf16.msra.mxu0 0
        %928 = vmatprep.subr.bf16.mxu0 0
        %929 = vmatpush1.bf16.msra.mxu0 0
        %930 = vmatprep.subr.bf16.mxu0 0
        %931 = vmatpush1.bf16.msra.mxu0 %v914
        %932 = vmatprep.subr.bf16.mxu0 0
        %933 = vmatpush2.bf16.msra.mxu0 0
        %934 = vmatprep.subr.bf16.mxu0 0
        %935 = vmatpush2.bf16.msra.mxu0 0
        %936 = vmatprep.subr.bf16.mxu0 0
        %937 = vmatpush2.bf16.msra.mxu0 0
        %938 = vmatprep.subr.bf16.mxu0 0
        %939 = vmatpush2.bf16.msra.mxu0 0
        %940 = vmatprep.subr.bf16.mxu0 0
        %941 = vmatpush2.bf16.msra.mxu0 0
        %942 = vmatprep.subr.bf16.mxu0 0
        %943 = vmatpush2.bf16.msra.mxu0 0
        %944 = vmatprep.subr.bf16.mxu0 0
        %945 = vmatpush2.bf16.msra.mxu0 0
        %946 = vmatprep.subr.bf16.mxu0 0
        %947 = vmatpush2.bf16.msra.mxu0 0
        %948 = vmatprep.mubr.bf16.mxu0 0
        %949 = vmatmul.mubr.bf16.gmra.mxu0 %v911
        %v950 = vpop.f32.mrf.mxu0
        %v951 = vadd.f32 0.0, %v950
        %v952 = vpop.f32.mrf.mxu0
        %v953 = vpop.f32.mrf.mxu0
        %v954 = vpop.f32.mrf.mxu0
        %955 = vdwg.mxu0
        %957 = vrot.lane.b32.xlu0 %v951, 16
        %v958 = vpop.permute.xlu0 %957
        %v960 = vsel %vm736, %v840, %v958
        %v961 = vpack.c.bf16 %v960, %v960
        %v962 = vld [vmem:[%s8] sm:$0xf]
        %v963 = vld [vmem:[%s8 + $0x4] sm:$0xf]
        %v964 = vld [vmem:[%s8 + $0x8] sm:$0xf]
        %v965 = vld [vmem:[%s8 + $0xc] sm:$0xf]
        %v966 = vld [vmem:[%s9] sm:$0x1]
        %v968 = vlaneseq
        %v969 = vshrl.u32 %v968, 7
        %v970 = vsub.s32 0, %v969
        %v971 = vrot.slane %v966, %v970
        %v977 = vunpack.c.l.b16 %v962
        %v978 = vunpack.c.l.b16 %v963
        %v979 = vunpack.c.l.b16 %v964
        %v980 = vunpack.c.l.b16 %v965
        %v981 = vpack.c.b16 %v978, %v977
        %v982 = vpack.c.b16 %v980, %v979
        %v986 = vsel %vm627, %v961, 0
        %988 = vmatprep.subr.bf16.mxu0 0
        %989 = vmatpush1.bf16.msra.mxu0 0
        %990 = vmatprep.subr.bf16.mxu0 0
        %991 = vmatpush1.bf16.msra.mxu0 0
        %992 = vmatprep.subr.bf16.mxu0 0
        %993 = vmatpush1.bf16.msra.mxu0 0
        %994 = vmatprep.subr.bf16.mxu0 0
        %995 = vmatpush1.bf16.msra.mxu0 0
        %996 = vmatprep.subr.bf16.mxu0 0
        %997 = vmatpush1.bf16.msra.mxu0 0
        %998 = vmatprep.subr.bf16.mxu0 0
        %999 = vmatpush1.bf16.msra.mxu0 0
        %1000 = vmatprep.subr.bf16.mxu0 0
        %1001 = vmatpush1.bf16.msra.mxu0 %v982
        %1002 = vmatprep.subr.bf16.mxu0 0
        %1003 = vmatpush1.bf16.msra.mxu0 %v981
        %1004 = vmatprep.subr.bf16.mxu0 0
        %1005 = vmatpush2.bf16.msra.mxu0 0
        %1006 = vmatprep.subr.bf16.mxu0 0
        %1007 = vmatpush2.bf16.msra.mxu0 0
        %1008 = vmatprep.subr.bf16.mxu0 0
        %1009 = vmatpush2.bf16.msra.mxu0 0
        %1010 = vmatprep.subr.bf16.mxu0 0
        %1011 = vmatpush2.bf16.msra.mxu0 0
        %1012 = vmatprep.subr.bf16.mxu0 0
        %1013 = vmatpush2.bf16.msra.mxu0 0
        %1014 = vmatprep.subr.bf16.mxu0 0
        %1015 = vmatpush2.bf16.msra.mxu0 0
        %1016 = vmatprep.subr.bf16.mxu0 0
        %1017 = vmatpush2.bf16.msra.mxu0 0
        %1018 = vmatprep.subr.bf16.mxu0 0
        %1019 = vmatpush2.bf16.msra.mxu0 0
        %1020 = vmatprep.mubr.bf16.mxu0 0
        %1021 = vmatmul.mubr.bf16.gmra.mxu0 %v986
        %v1022 = vpop.f32.mrf.mxu0
        %v1023 = vadd.f32 %v971, %v1022
        %v1024 = vpop.f32.mrf.mxu0
        %v1025 = vpop.f32.mrf.mxu0
        %v1026 = vpop.f32.mrf.mxu0
        %1027 = vdwg.mxu0
        %v1028 = vadd.f32 %v655, %v1023
        %v1029 = vld [vmem:[%s10] sm:$0x1]
        %v1030 = vld [vmem:[%s11] sm:$0x1]
        %v1031 = vsel %vm627, %v1028, 0.0
        %1032 = vadd.xlane.f32.xlu0 %v1031
        %v1033 = vpop.xlane.xlu0 %1032
        %v1034 = vmul.f32 %v1033, %v631
        %v1035 = vsub.f32 %v1028, %v1034
        %v1036 = vmul.f32 %v1035, %v1035
        %v1037 = vsel %vm627, %v1036, 0.0
        %1038 = vadd.xlane.f32.xlu0 %v1037
        %v1039 = vpop.xlane.xlu0 %1038
        %v1040 = vmul.f32 %v1039, %v631
        %v1041 = vadd.f32 %v1040, 1e-12
        %v1042 = vrsqrt.pop %v1041
        %v1043 = vmul.f32 %v1035, %v1042
        %v1045 = vlaneseq
        %v1046 = vshrl.u32 %v1045, 7
        %v1047 = vsub.s32 0, %v1046
        %v1048 = vrot.slane %v1029, %v1047
        %v1050 = vmul.f32 %v1043, %v1048
        %v1052 = vlaneseq
        %v1053 = vshrl.u32 %v1052, 7
        %v1054 = vsub.s32 0, %v1053
        %v1055 = vrot.slane %v1030, %v1054
        %v1057 = vadd.f32 %v1050, %v1055
        %v1058 = vpack.c.bf16 %v1057, %v1057
        %v1059 = vld [vmem:[%s12] sm:$0xf]
        %v1060 = vld [vmem:[%s12 + $0x4] sm:$0xf]
        %v1061 = vld [vmem:[%s12 + $0x8] sm:$0xf]
        %v1062 = vld [vmem:[%s12 + $0xc] sm:$0xf]
        %v1063 = vld [vmem:[%s13] sm:$0x1]
        %v1065 = vlaneseq
        %v1066 = vshrl.u32 %v1065, 7
        %v1067 = vsub.s32 0, %v1066
        %v1068 = vrot.slane %v1063, %v1067
        %v1074 = vunpack.c.l.b16 %v1059
        %v1075 = vunpack.c.l.b16 %v1060
        %v1076 = vunpack.c.l.b16 %v1061
        %v1077 = vunpack.c.l.b16 %v1062
        %v1078 = vpack.c.b16 %v1075, %v1074
        %v1079 = vpack.c.b16 %v1077, %v1076
        %v1083 = vsel %vm627, %v1058, 0
        %1085 = vmatprep.subr.bf16.mxu0 0
        %1086 = vmatpush1.bf16.msra.mxu0 0
        %1087 = vmatprep.subr.bf16.mxu0 0
        %1088 = vmatpush1.bf16.msra.mxu0 0
        %1089 = vmatprep.subr.bf16.mxu0 0
        %1090 = vmatpush1.bf16.msra.mxu0 0
        %1091 = vmatprep.subr.bf16.mxu0 0
        %1092 = vmatpush1.bf16.msra.mxu0 0
        %1093 = vmatprep.subr.bf16.mxu0 0
        %1094 = vmatpush1.bf16.msra.mxu0 0
        %1095 = vmatprep.subr.bf16.mxu0 0
        %1096 = vmatpush1.bf16.msra.mxu0 0
        %1097 = vmatprep.subr.bf16.mxu0 0
        %1098 = vmatpush1.bf16.msra.mxu0 %v1079
        %1099 = vmatprep.subr.bf16.mxu0 0
        %1100 = vmatpush1.bf16.msra.mxu0 %v1078
        %1101 = vmatprep.subr.bf16.mxu0 0
        %1102 = vmatpush2.bf16.msra.mxu0 0
        %1103 = vmatprep.subr.bf16.mxu0 0
        %1104 = vmatpush2.bf16.msra.mxu0 0
        %1105 = vmatprep.subr.bf16.mxu0 0
        %1106 = vmatpush2.bf16.msra.mxu0 0
        %1107 = vmatprep.subr.bf16.mxu0 0
        %1108 = vmatpush2.bf16.msra.mxu0 0
        %1109 = vmatprep.subr.bf16.mxu0 0
        %1110 = vmatpush2.bf16.msra.mxu0 0
        %1111 = vmatprep.subr.bf16.mxu0 0
        %1112 = vmatpush2.bf16.msra.mxu0 0
        %1113 = vmatprep.subr.bf16.mxu0 0
        %1114 = vmatpush2.bf16.msra.mxu0 0
        %1115 = vmatprep.subr.bf16.mxu0 0
        %1116 = vmatpush2.bf16.msra.mxu0 0
        %1117 = vmatprep.mubr.bf16.mxu0 0
        %1118 = vmatmul.mubr.bf16.gmra.mxu0 %v1083
        %v1119 = vpop.f32.mrf.mxu0
        %v1120 = vadd.f32 %v1068, %v1119
        %v1121 = vpop.f32.mrf.mxu0
        %v1122 = vpop.f32.mrf.mxu0
        %v1123 = vpop.f32.mrf.mxu0
        %1124 = vdwg.mxu0
        %v1125 = vmul.f32 %v1120, 0.5
        %v1126 = vmul.f32 %v1120, 0.044715
        %v1127 = vmul.f32 %v1126, %v1120
        %v1128 = vmul.f32 %v1127, %v1120
        %v1129 = vadd.f32 %v1120, %v1128
        %v1130 = vmul.f32 %v1129, 0.7978846
        %v1131 = vtanh.pop %v1130
        %v1132 = vadd.f32 %v1131, 1.0
        %v1133 = vmul.f32 %v1125, %v1132
        %v1134 = vpack.c.bf16 %v1133, %v1133
        %v1135 = vld [vmem:[%s14] sm:$0xf]
        %v1136 = vld [vmem:[%s14 + $0x4] sm:$0xf]
        %v1137 = vld [vmem:[%s14 + $0x8] sm:$0xf]
        %v1138 = vld [vmem:[%s14 + $0xc] sm:$0xf]
        %v1139 = vld [vmem:[%s14 + $0x10] sm:$0xf]
        %v1140 = vld [vmem:[%s14 + $0x14] sm:$0xf]
        %v1141 = vld [vmem:[%s14 + $0x18] sm:$0xf]
        %v1142 = vld [vmem:[%s14 + $0x1c] sm:$0xf]
        %v1143 = vld [vmem:[%s15] sm:$0x1]
        %v1145 = vlaneseq
        %v1146 = vshrl.u32 %v1145, 7
        %v1147 = vsub.s32 0, %v1146
        %v1148 = vrot.slane %v1143, %v1147
        %v1158 = vunpack.c.l.b16 %v1135
        %v1159 = vunpack.c.l.b16 %v1136
        %v1160 = vunpack.c.l.b16 %v1137
        %v1161 = vunpack.c.l.b16 %v1138
        %v1162 = vunpack.c.l.b16 %v1139
        %v1163 = vunpack.c.l.b16 %v1140
        %v1164 = vunpack.c.l.b16 %v1141
        %v1165 = vunpack.c.l.b16 %v1142
        %v1166 = vpack.c.b16 %v1159, %v1158
        %v1167 = vpack.c.b16 %v1161, %v1160
        %v1168 = vpack.c.b16 %v1163, %v1162
        %v1169 = vpack.c.b16 %v1165, %v1164
        %vm1174 = vcmask 523264
        %v1176 = vsel %vm1174, %v1134, 0
        %1178 = vmatprep.subr.bf16.mxu0 0
        %1179 = vmatpush1.bf16.msra.mxu0 0
        %1180 = vmatprep.subr.bf16.mxu0 0
        %1181 = vmatpush1.bf16.msra.mxu0 0
        %1182 = vmatprep.subr.bf16.mxu0 0
        %1183 = vmatpush1.bf16.msra.mxu0 0
        %1184 = vmatprep.subr.bf16.mxu0 0
        %1185 = vmatpush1.bf16.msra.mxu0 0
        %1186 = vmatprep.subr.bf16.mxu0 0
        %1187 = vmatpush1.bf16.msra.mxu0 %v1169
        %1188 = vmatprep.subr.bf16.mxu0 0
        %1189 = vmatpush1.bf16.msra.mxu0 %v1168
        %1190 = vmatprep.subr.bf16.mxu0 0
        %1191 = vmatpush1.bf16.msra.mxu0 %v1167
        %1192 = vmatprep.subr.bf16.mxu0 0
        %1193 = vmatpush1.bf16.msra.mxu0 %v1166
        %1194 = vmatprep.subr.bf16.mxu0 0
        %1195 = vmatpush2.bf16.msra.mxu0 0
        %1196 = vmatprep.subr.bf16.mxu0 0
        %1197 = vmatpush2.bf16.msra.mxu0 0
        %1198 = vmatprep.subr.bf16.mxu0 0
        %1199 = vmatpush2.bf16.msra.mxu0 0
        %1200 = vmatprep.subr.bf16.mxu0 0
        %1201 = vmatpush2.bf16.msra.mxu0 0
        %1202 = vmatprep.subr.bf16.mxu0 0
        %1203 = vmatpush2.bf16.msra.mxu0 0
        %1204 = vmatprep.subr.bf16.mxu0 0
        %1205 = vmatpush2.bf16.msra.mxu0 0
        %1206 = vmatprep.subr.bf16.mxu0 0
        %1207 = vmatpush2.bf16.msra.mxu0 0
        %1208 = vmatprep.subr.bf16.mxu0 0
        %1209 = vmatpush2.bf16.msra.mxu0 0
        %1210 = vmatprep.mubr.bf16.mxu0 0
        %1211 = vmatmul.mubr.bf16.gmra.mxu0 %v1176
        %v1212 = vpop.f32.mrf.mxu0
        %v1213 = vadd.f32 %v1148, %v1212
        %v1214 = vpop.f32.mrf.mxu0
        %v1215 = vpop.f32.mrf.mxu0
        %v1216 = vpop.f32.mrf.mxu0
        %1217 = vdwg.mxu0
        %v1218 = vadd.f32 %v1057, %v1213
        %v1219 = vld [vmem:[%s16] sm:$0x1]
        %v1220 = vld [vmem:[%s17] sm:$0x1]
        %v1221 = vsel %vm627, %v1218, 0.0
        %1222 = vadd.xlane.f32.xlu0 %v1221
        %v1223 = vpop.xlane.xlu0 %1222
        %v1224 = vmul.f32 %v1223, %v631
        %v1225 = vsub.f32 %v1218, %v1224
        %v1226 = vmul.f32 %v1225, %v1225
        %v1227 = vsel %vm627, %v1226, 0.0
        %1228 = vadd.xlane.f32.xlu0 %v1227
        %v1229 = vpop.xlane.xlu0 %1228
        %v1230 = vmul.f32 %v1229, %v631
        %v1231 = vadd.f32 %v1230, 1e-12
        %v1232 = vrsqrt.pop %v1231
        %v1233 = vmul.f32 %v1225, %v1232
        %v1235 = vlaneseq
        %v1236 = vshrl.u32 %v1235, 7
        %v1237 = vsub.s32 0, %v1236
        %v1238 = vrot.slane %v1219, %v1237
        %v1240 = vmul.f32 %v1233, %v1238
        %v1242 = vlaneseq
        %v1243 = vshrl.u32 %v1242, 7
        %v1244 = vsub.s32 0, %v1243
        %v1245 = vrot.slane %v1220, %v1244
        %v1247 = vadd.f32 %v1240, %v1245
        %v1248 = vpack.c.bf16 %v1247, %v1247
        %s1249 = scalar_lea.vmem %s6, 16
        %v1250 = vld [vmem:[%s1249] sm:$0xf]
        %v1251 = vld [vmem:[%s1249 + $0x4] sm:$0xf]
        %v1252 = vld [vmem:[%s1249 + $0x8] sm:$0xf]
        %v1253 = vld [vmem:[%s1249 + $0xc] sm:$0xf]
        %s1254 = scalar_lea.vmem %s7, 1
        %v1255 = vld [vmem:[%s1254] sm:$0x1]
        %v1257 = vlaneseq
        %v1258 = vshrl.u32 %v1257, 7
        %v1259 = vsub.s32 0, %v1258
        %v1260 = vrot.slane %v1255, %v1259
        %v1266 = vunpack.c.l.b16 %v1250
        %v1267 = vunpack.c.l.b16 %v1251
        %v1268 = vunpack.c.l.b16 %v1252
        %v1269 = vunpack.c.l.b16 %v1253
        %v1270 = vpack.c.b16 %v1267, %v1266
        %v1271 = vpack.c.b16 %v1269, %v1268
        %v1275 = vsel %vm627, %v1248, 0
        %1277 = vmatprep.subr.bf16.mxu0 0
        %1278 = vmatpush1.bf16.msra.mxu0 0
        %1279 = vmatprep.subr.bf16.mxu0 0
        %1280 = vmatpush1.bf16.msra.mxu0 0
        %1281 = vmatprep.subr.bf16.mxu0 0
        %1282 = vmatpush1.bf16.msra.mxu0 0
        %1283 = vmatprep.subr.bf16.mxu0 0
        %1284 = vmatpush1.bf16.msra.mxu0 0
        %1285 = vmatprep.subr.bf16.mxu0 0
        %1286 = vmatpush1.bf16.msra.mxu0 0
        %1287 = vmatprep.subr.bf16.mxu0 0
        %1288 = vmatpush1.bf16.msra.mxu0 0
        %1289 = vmatprep.subr.bf16.mxu0 0
        %1290 = vmatpush1.bf16.msra.mxu0 %v1271
        %1291 = vmatprep.subr.bf16.mxu0 0
        %1292 = vmatpush1.bf16.msra.mxu0 %v1270
        %1293 = vmatprep.subr.bf16.mxu0 0
        %1294 = vmatpush2.bf16.msra.mxu0 0
        %1295 = vmatprep.subr.bf16.mxu0 0
        %1296 = vmatpush2.bf16.msra.mxu0 0
        %1297 = vmatprep.subr.bf16.mxu0 0
        %1298 = vmatpush2.bf16.msra.mxu0 0
        %1299 = vmatprep.subr.bf16.mxu0 0
        %1300 = vmatpush2.bf16.msra.mxu0 0
        %1301 = vmatprep.subr.bf16.mxu0 0
        %1302 = vmatpush2.bf16.msra.mxu0 0
        %1303 = vmatprep.subr.bf16.mxu0 0
        %1304 = vmatpush2.bf16.msra.mxu0 0
        %1305 = vmatprep.subr.bf16.mxu0 0
        %1306 = vmatpush2.bf16.msra.mxu0 0
        %1307 = vmatprep.subr.bf16.mxu0 0
        %1308 = vmatpush2.bf16.msra.mxu0 0
        %1309 = vmatprep.mubr.bf16.mxu0 0
        %1310 = vmatmul.mubr.bf16.gmra.mxu0 %v1275
        %v1311 = vpop.f32.mrf.mxu0
        %v1312 = vadd.f32 %v1260, %v1311
        %v1313 = vpop.f32.mrf.mxu0
        %v1314 = vpop.f32.mrf.mxu0
        %v1315 = vpop.f32.mrf.mxu0
        %1316 = vdwg.mxu0
        %v1317 = vmul.f32 %v1312, 0.25
        %v1318 = vpack.c.bf16 %v1317, %v1317
        %v1319 = vpack.c.bf16 %v1312, %v1312
        %1321 = vrot.lane.b32.xlu0 %v1319, 96
        %v1322 = vpop.permute.xlu0 %1321
        %v1324 = vsel %vm736, %v1318, 0
        %v1327 = vsel %vm736, %v1322, 0
        %1329 = vmatprep.subr.bf16.mxu0 0
        %1330 = vmatpush1.bf16.xpose.msra.mxu0 0
        %1331 = vmatprep.subr.bf16.mxu0 0
        %1332 = vmatpush1.bf16.xpose.msra.mxu0 0
        %1333 = vmatprep.subr.bf16.mxu0 0
        %1334 = vmatpush1.bf16.xpose.msra.mxu0 0
        %1335 = vmatprep.subr.bf16.mxu0 0
        %1336 = vmatpush1.bf16.xpose.msra.mxu0 0
        %1337 = vmatprep.subr.bf16.mxu0 0
        %1338 = vmatpush1.bf16.xpose.msra.mxu0 0
        %1339 = vmatprep.subr.bf16.mxu0 0
        %1340 = vmatpush1.bf16.xpose.msra.mxu0 0
        %1341 = vmatprep.subr.bf16.mxu0 0
        %1342 = vmatpush1.bf16.xpose.msra.mxu0 0
        %1343 = vmatprep.subr.bf16.mxu0 0
        %1344 = vmatpush1.bf16.xpose.msra.mxu0 %v1327
        %1345 = vmatprep.subr.bf16.mxu0 0
        %1346 = vmatpush2.bf16.xpose.msra.mxu0 0
        %1347 = vmatprep.subr.bf16.mxu0 0
        %1348 = vmatpush2.bf16.xpose.msra.mxu0 0
        %1349 = vmatprep.subr.bf16.mxu0 0
        %1350 = vmatpush2.bf16.xpose.msra.mxu0 0
        %1351 = vmatprep.subr.bf16.mxu0 0
        %1352 = vmatpush2.bf16.xpose.msra.mxu0 0
        %1353 = vmatprep.subr.bf16.mxu0 0
        %1354 = vmatpush2.bf16.xpose.msra.mxu0 0
        %1355 = vmatprep.subr.bf16.mxu0 0
        %1356 = vmatpush2.bf16.xpose.msra.mxu0 0
        %1357 = vmatprep.subr.bf16.mxu0 0
        %1358 = vmatpush2.bf16.xpose.msra.mxu0 0
        %1359 = vmatprep.subr.bf16.mxu0 0
        %1360 = vmatpush2.bf16.xpose.msra.mxu0 0
        %1361 = vmatprep.mubr.bf16.mxu0 0
        %1362 = vmatmul.mubr.bf16.gmra.mxu0 %v1324
        %v1363 = vpop.f32.mrf.mxu0
        %v1364 = vadd.f32 %v731, %v1363
        %v1365 = vpop.f32.mrf.mxu0
        %v1366 = vpop.f32.mrf.mxu0
        %v1367 = vpop.f32.mrf.mxu0
        %1368 = vdwg.mxu0
        %v1369 = vsel %vm783, %v1364, -inf
        %1370 = vmax.xlane.f32.xlu0 %v1369
        %v1371 = vpop.xlane.xlu0 %1370
        %v1372 = vsub.f32 %v1364, %v1371
        %v1373 = vmul.f32 %v1372, 1.442695
        %v1374 = vpow.pop %v1373
        %v1375 = vsel %vm783, %v1374, 0.0
        %1376 = vadd.xlane.f32.xlu0 %v1375
        %v1377 = vpop.xlane.xlu0 %1376
        %v1378 = vrcp.pop %v1377
        %v1379 = vmul.f32 %v1374, %v1378
        %v1380 = vpack.c.bf16 %v1379, %v1379
        %1381 = vrot.lane.b32.xlu0 %v1319, 64
        %v1382 = vpop.permute.xlu0 %1381
        %v1384 = vsel %vm783, %v1380, 0
        %v1387 = vsel %vm801, %v1382, 0
        %1389 = vmatprep.subr.bf16.mxu0 0
        %1390 = vmatpush1.bf16.msra.mxu0 0
        %1391 = vmatprep.subr.bf16.mxu0 0
        %1392 = vmatpush1.bf16.msra.mxu0 0
        %1393 = vmatprep.subr.bf16.mxu0 0
        %1394 = vmatpush1.bf16.msra.mxu0 0
        %1395 = vmatprep.subr.bf16.mxu0 0
        %1396 = vmatpush1.bf16.msra.mxu0 0
        %1397 = vmatprep.subr.bf16.mxu0 0
        %1398 = vmatpush1.bf16.msra.mxu0 0
        %1399 = vmatprep.subr.bf16.mxu0 0
        %1400 = vmatpush1.bf16.msra.mxu0 0
        %1401 = vmatprep.subr.bf16.mxu0 0
        %1402 = vmatpush1.bf16.msra.mxu0 0
        %1403 = vmatprep.subr.bf16.mxu0 0
        %1404 = vmatpush1.bf16.msra.mxu0 %v1387
        %1405 = vmatprep.subr.bf16.mxu0 0
        %1406 = vmatpush2.bf16.msra.mxu0 0
        %1407 = vmatprep.subr.bf16.mxu0 0
        %1408 = vmatpush2.bf16.msra.mxu0 0
        %1409 = vmatprep.subr.bf16.mxu0 0
        %1410 = vmatpush2.bf16.msra.mxu0 0
        %1411 = vmatprep.subr.bf16.mxu0 0
        %1412 = vmatpush2.bf16.msra.mxu0 0
        %1413 = vmatprep.subr.bf16.mxu0 0
        %1414 = vmatpush2.bf16.msra.mxu0 0
        %1415 = vmatprep.subr.bf16.mxu0 0
        %1416 = vmatpush2.bf16.msra.mxu0 0
        %1417 = vmatprep.subr.bf16.mxu0 0
        %1418 = vmatpush2.bf16.msra.mxu0 0
        %1419 = vmatprep.subr.bf16.mxu0 0
        %1420 = vmatpush2.bf16.msra.mxu0 0
        %1421 = vmatprep.mubr.bf16.mxu0 0
        %1422 = vmatmul.mubr.bf16.gmra.mxu0 %v1384
        %v1423 = vpop.f32.mrf.mxu0
        %v1424 = vadd.f32 0.0, %v1423
        %v1425 = vpop.f32.mrf.mxu0
        %v1426 = vpop.f32.mrf.mxu0
        %v1427 = vpop.f32.mrf.mxu0
        %1428 = vdwg.mxu0
        %1430 = vrot.lane.b32.xlu0 %v1318, 112
        %v1431 = vpop.permute.xlu0 %1430
        %1432 = vrot.lane.b32.xlu0 %v1319, 80
        %v1433 = vpop.permute.xlu0 %1432
        %v1435 = vsel %vm736, %v1431, 0
        %v1438 = vsel %vm736, %v1433, 0
        %1440 = vmatprep.subr.bf16.mxu0 0
        %1441 = vmatpush1.bf16.xpose.msra.mxu0 0
        %1442 = vmatprep.subr.bf16.mxu0 0
        %1443 = vmatpush1.bf16.xpose.msra.mxu0 0
        %1444 = vmatprep.subr.bf16.mxu0 0
        %1445 = vmatpush1.bf16.xpose.msra.mxu0 0
        %1446 = vmatprep.subr.bf16.mxu0 0
        %1447 = vmatpush1.bf16.xpose.msra.mxu0 0
        %1448 = vmatprep.subr.bf16.mxu0 0
        %1449 = vmatpush1.bf16.xpose.msra.mxu0 0
        %1450 = vmatprep.subr.bf16.mxu0 0
        %1451 = vmatpush1.bf16.xpose.msra.mxu0 0
        %1452 = vmatprep.subr.bf16.mxu0 0
        %1453 = vmatpush1.bf16.xpose.msra.mxu0 0
        %1454 = vmatprep.subr.bf16.mxu0 0
        %1455 = vmatpush1.bf16.xpose.msra.mxu0 %v1438
        %1456 = vmatprep.subr.bf16.mxu0 0
        %1457 = vmatpush2.bf16.xpose.msra.mxu0 0
        %1458 = vmatprep.subr.bf16.mxu0 0
        %1459 = vmatpush2.bf16.xpose.msra.mxu0 0
        %1460 = vmatprep.subr.bf16.mxu0 0
        %1461 = vmatpush2.bf16.xpose.msra.mxu0 0
        %1462 = vmatprep.subr.bf16.mxu0 0
        %1463 = vmatpush2.bf16.xpose.msra.mxu0 0
        %1464 = vmatprep.subr.bf16.mxu0 0
        %1465 = vmatpush2.bf16.xpose.msra.mxu0 0
        %1466 = vmatprep.subr.bf16.mxu0 0
        %1467 = vmatpush2.bf16.xpose.msra.mxu0 0
        %1468 = vmatprep.subr.bf16.mxu0 0
        %1469 = vmatpush2.bf16.xpose.msra.mxu0 0
        %1470 = vmatprep.subr.bf16.mxu0 0
        %1471 = vmatpush2.bf16.xpose.msra.mxu0 0
        %1472 = vmatprep.mubr.bf16.mxu0 0
        %1473 = vmatmul.mubr.bf16.gmra.mxu0 %v1435
        %v1474 = vpop.f32.mrf.mxu0
        %v1475 = vadd.f32 %v731, %v1474
        %v1476 = vpop.f32.mrf.mxu0
        %v1477 = vpop.f32.mrf.mxu0
        %v1478 = vpop.f32.mrf.mxu0
        %1479 = vdwg.mxu0
        %v1480 = vsel %vm783, %v1475, -inf
        %1481 = vmax.xlane.f32.xlu0 %v1480
        %v1482 = vpop.xlane.xlu0 %1481
        %v1483 = vsub.f32 %v1475, %v1482
        %v1484 = vmul.f32 %v1483, 1.442695
        %v1485 = vpow.pop %v1484
        %v1486 = vsel %vm783, %v1485, 0.0
        %1487 = vadd.xlane.f32.xlu0 %v1486
        %v1488 = vpop.xlane.xlu0 %1487
        %v1489 = vrcp.pop %v1488
        %v1490 = vmul.f32 %v1485, %v1489
        %v1491 = vpack.c.bf16 %v1490, %v1490
        %1492 = vrot.lane.b32.xlu0 %v1319, 48
        %v1493 = vpop.permute.xlu0 %1492
        %v1495 = vsel %vm783, %v1491, 0
        %v1498 = vsel %vm801, %v1493, 0
        %1500 = vmatprep.subr.bf16.mxu0 0
        %1501 = vmatpush1.bf16.msra.mxu0 0
        %1502 = vmatprep.subr.bf16.mxu0 0
        %1503 = vmatpush1.bf16.msra.mxu0 0
        %1504 = vmatprep.subr.bf16.mxu0 0
        %1505 = vmatpush1.bf16.msra.mxu0 0
        %1506 = vmatprep.subr.bf16.mxu0 0
        %1507 = vmatpush1.bf16.msra.mxu0 0
        %1508 = vmatprep.subr.bf16.mxu0 0
        %1509 = vmatpush1.bf16.msra.mxu0 0
        %1510 = vmatprep.subr.bf16.mxu0 0
        %1511 = vmatpush1.bf16.msra.mxu0 0
        %1512 = vmatprep.subr.bf16.mxu0 0
        %1513 = vmatpush1.bf16.msra.mxu0 0
        %1514 = vmatprep.subr.bf16.mxu0 0
        %1515 = vmatpush1.bf16.msra.mxu0 %v1498
        %1516 = vmatprep.subr.bf16.mxu0 0
        %1517 = vmatpush2.bf16.msra.mxu0 0
        %1518 = vmatprep.subr.bf16.mxu0 0
        %1519 = vmatpush2.bf16.msra.mxu0 0
        %1520 = vmatprep.subr.bf16.mxu0 0
        %1521 = vmatpush2.bf16.msra.mxu0 0
        %1522 = vmatprep.subr.bf16.mxu0 0
        %1523 = vmatpush2.bf16.msra.mxu0 0
        %1524 = vmatprep.subr.bf16.mxu0 0
        %1525 = vmatpush2.bf16.msra.mxu0 0
        %1526 = vmatprep.subr.bf16.mxu0 0
        %1527 = vmatpush2.bf16.msra.mxu0 0
        %1528 = vmatprep.subr.bf16.mxu0 0
        %1529 = vmatpush2.bf16.msra.mxu0 0
        %1530 = vmatprep.subr.bf16.mxu0 0
        %1531 = vmatpush2.bf16.msra.mxu0 0
        %1532 = vmatprep.mubr.bf16.mxu0 0
        %1533 = vmatmul.mubr.bf16.gmra.mxu0 %v1495
        %v1534 = vpop.f32.mrf.mxu0
        %v1535 = vadd.f32 0.0, %v1534
        %v1536 = vpop.f32.mrf.mxu0
        %v1537 = vpop.f32.mrf.mxu0
        %v1538 = vpop.f32.mrf.mxu0
        %1539 = vdwg.mxu0
        %1541 = vrot.lane.b32.xlu0 %v1535, 16
        %v1542 = vpop.permute.xlu0 %1541
        %v1544 = vsel %vm736, %v1424, %v1542
        %v1545 = vpack.c.bf16 %v1544, %v1544
        %s1546 = scalar_lea.vmem %s8, 16
        %v1547 = vld [vmem:[%s1546] sm:$0xf]
        %v1548 = vld [vmem:[%s1546 + $0x4] sm:$0xf]
        %v1549 = vld [vmem:[%s1546 + $0x8] sm:$0xf]
        %v1550 = vld [vmem:[%s1546 + $0xc] sm:$0xf]
        %s1551 = scalar_lea.vmem %s9, 1
        %v1552 = vld [vmem:[%s1551] sm:$0x1]
        %v1554 = vlaneseq
        %v1555 = vshrl.u32 %v1554, 7
        %v1556 = vsub.s32 0, %v1555
        %v1557 = vrot.slane %v1552, %v1556
        %v1563 = vunpack.c.l.b16 %v1547
        %v1564 = vunpack.c.l.b16 %v1548
        %v1565 = vunpack.c.l.b16 %v1549
        %v1566 = vunpack.c.l.b16 %v1550
        %v1567 = vpack.c.b16 %v1564, %v1563
        %v1568 = vpack.c.b16 %v1566, %v1565
        %v1572 = vsel %vm627, %v1545, 0
        %1574 = vmatprep.subr.bf16.mxu0 0
        %1575 = vmatpush1.bf16.msra.mxu0 0
        %1576 = vmatprep.subr.bf16.mxu0 0
        %1577 = vmatpush1.bf16.msra.mxu0 0
        %1578 = vmatprep.subr.bf16.mxu0 0
        %1579 = vmatpush1.bf16.msra.mxu0 0
        %1580 = vmatprep.subr.bf16.mxu0 0
        %1581 = vmatpush1.bf16.msra.mxu0 0
        %1582 = vmatprep.subr.bf16.mxu0 0
        %1583 = vmatpush1.bf16.msra.mxu0 0
        %1584 = vmatprep.subr.bf16.mxu0 0
        %1585 = vmatpush1.bf16.msra.mxu0 0
        %1586 = vmatprep.subr.bf16.mxu0 0
        %1587 = vmatpush1.bf16.msra.mxu0 %v1568
        %1588 = vmatprep.subr.bf16.mxu0 0
        %1589 = vmatpush1.bf16.msra.mxu0 %v1567
        %1590 = vmatprep.subr.bf16.mxu0 0
        %1591 = vmatpush2.bf16.msra.mxu0 0
        %1592 = vmatprep.subr.bf16.mxu0 0
        %1593 = vmatpush2.bf16.msra.mxu0 0
        %1594 = vmatprep.subr.bf16.mxu0 0
        %1595 = vmatpush2.bf16.msra.mxu0 0
        %1596 = vmatprep.subr.bf16.mxu0 0
        %1597 = vmatpush2.bf16.msra.mxu0 0
        %1598 = vmatprep.subr.bf16.mxu0 0
        %1599 = vmatpush2.bf16.msra.mxu0 0
        %1600 = vmatprep.subr.bf16.mxu0 0
        %1601 = vmatpush2.bf16.msra.mxu0 0
        %1602 = vmatprep.subr.bf16.mxu0 0
        %1603 = vmatpush2.bf16.msra.mxu0 0
        %1604 = vmatprep.subr.bf16.mxu0 0
        %1605 = vmatpush2.bf16.msra.mxu0 0
        %1606 = vmatprep.mubr.bf16.mxu0 0
        %1607 = vmatmul.mubr.bf16.gmra.mxu0 %v1572
        %v1608 = vpop.f32.mrf.mxu0
        %v1609 = vadd.f32 %v1557, %v1608
        %v1610 = vpop.f32.mrf.mxu0
        %v1611 = vpop.f32.mrf.mxu0
        %v1612 = vpop.f32.mrf.mxu0
        %1613 = vdwg.mxu0
        %v1614 = vadd.f32 %v1247, %v1609
        %s1615 = scalar_lea.vmem %s10, 1
        %v1616 = vld [vmem:[%s1615] sm:$0x1]
        %s1617 = scalar_lea.vmem %s11, 1
        %v1618 = vld [vmem:[%s1617] sm:$0x1]
        %v1619 = vsel %vm627, %v1614, 0.0
        %1620 = vadd.xlane.f32.xlu0 %v1619
        %v1621 = vpop.xlane.xlu0 %1620
        %v1622 = vmul.f32 %v1621, %v631
        %v1623 = vsub.f32 %v1614, %v1622
        %v1624 = vmul.f32 %v1623, %v1623
        %v1625 = vsel %vm627, %v1624, 0.0
        %1626 = vadd.xlane.f32.xlu0 %v1625
        %v1627 = vpop.xlane.xlu0 %1626
        %v1628 = vmul.f32 %v1627, %v631
        %v1629 = vadd.f32 %v1628, 1e-12
        %v1630 = vrsqrt.pop %v1629
        %v1631 = vmul.f32 %v1623, %v1630
        %v1633 = vlaneseq
        %v1634 = vshrl.u32 %v1633, 7
        %v1635 = vsub.s32 0, %v1634
        %v1636 = vrot.slane %v1616, %v1635
        %v1638 = vmul.f32 %v1631, %v1636
        %v1640 = vlaneseq
        %v1641 = vshrl.u32 %v1640, 7
        %v1642 = vsub.s32 0, %v1641
        %v1643 = vrot.slane %v1618, %v1642
        %v1645 = vadd.f32 %v1638, %v1643
        %v1646 = vpack.c.bf16 %v1645, %v1645
        %s1647 = scalar_lea.vmem %s12, 16
        %v1648 = vld [vmem:[%s1647] sm:$0xf]
        %v1649 = vld [vmem:[%s1647 + $0x4] sm:$0xf]
        %v1650 = vld [vmem:[%s1647 + $0x8] sm:$0xf]
        %v1651 = vld [vmem:[%s1647 + $0xc] sm:$0xf]
        %s1652 = scalar_lea.vmem %s13, 1
        %v1653 = vld [vmem:[%s1652] sm:$0x1]
        %v1655 = vlaneseq
        %v1656 = vshrl.u32 %v1655, 7
        %v1657 = vsub.s32 0, %v1656
        %v1658 = vrot.slane %v1653, %v1657
        %v1664 = vunpack.c.l.b16 %v1648
        %v1665 = vunpack.c.l.b16 %v1649
        %v1666 = vunpack.c.l.b16 %v1650
        %v1667 = vunpack.c.l.b16 %v1651
        %v1668 = vpack.c.b16 %v1665, %v1664
        %v1669 = vpack.c.b16 %v1667, %v1666
        %v1673 = vsel %vm627, %v1646, 0
        %1675 = vmatprep.subr.bf16.mxu0 0
        %1676 = vmatpush1.bf16.msra.mxu0 0
        %1677 = vmatprep.subr.bf16.mxu0 0
        %1678 = vmatpush1.bf16.msra.mxu0 0
        %1679 = vmatprep.subr.bf16.mxu0 0
        %1680 = vmatpush1.bf16.msra.mxu0 0
        %1681 = vmatprep.subr.bf16.mxu0 0
        %1682 = vmatpush1.bf16.msra.mxu0 0
        %1683 = vmatprep.subr.bf16.mxu0 0
        %1684 = vmatpush1.bf16.msra.mxu0 0
        %1685 = vmatprep.subr.bf16.mxu0 0
        %1686 = vmatpush1.bf16.msra.mxu0 0
        %1687 = vmatprep.subr.bf16.mxu0 0
        %1688 = vmatpush1.bf16.msra.mxu0 %v1669
        %1689 = vmatprep.subr.bf16.mxu0 0
        %1690 = vmatpush1.bf16.msra.mxu0 %v1668
        %1691 = vmatprep.subr.bf16.mxu0 0
        %1692 = vmatpush2.bf16.msra.mxu0 0
        %1693 = vmatprep.subr.bf16.mxu0 0
        %1694 = vmatpush2.bf16.msra.mxu0 0
        %1695 = vmatprep.subr.bf16.mxu0 0
        %1696 = vmatpush2.bf16.msra.mxu0 0
        %1697 = vmatprep.subr.bf16.mxu0 0
        %1698 = vmatpush2.bf16.msra.mxu0 0
        %1699 = vmatprep.subr.bf16.mxu0 0
        %1700 = vmatpush2.bf16.msra.mxu0 0
        %1701 = vmatprep.subr.bf16.mxu0 0
        %1702 = vmatpush2.bf16.msra.mxu0 0
        %1703 = vmatprep.subr.bf16.mxu0 0
        %1704 = vmatpush2.bf16.msra.mxu0 0
        %1705 = vmatprep.subr.bf16.mxu0 0
        %1706 = vmatpush2.bf16.msra.mxu0 0
        %1707 = vmatprep.mubr.bf16.mxu0 0
        %1708 = vmatmul.mubr.bf16.gmra.mxu0 %v1673
        %v1709 = vpop.f32.mrf.mxu0
        %v1710 = vadd.f32 %v1658, %v1709
        %v1711 = vpop.f32.mrf.mxu0
        %v1712 = vpop.f32.mrf.mxu0
        %v1713 = vpop.f32.mrf.mxu0
        %1714 = vdwg.mxu0
        %v1715 = vmul.f32 %v1710, 0.5
        %v1716 = vmul.f32 %v1710, 0.044715
        %v1717 = vmul.f32 %v1716, %v1710
        %v1718 = vmul.f32 %v1717, %v1710
        %v1719 = vadd.f32 %v1710, %v1718
        %v1720 = vmul.f32 %v1719, 0.7978846
        %v1721 = vtanh.pop %v1720
        %v1722 = vadd.f32 %v1721, 1.0
        %v1723 = vmul.f32 %v1715, %v1722
        %v1724 = vpack.c.bf16 %v1723, %v1723
        %s1725 = scalar_lea.vmem %s14, 32
        %v1726 = vld [vmem:[%s1725] sm:$0xf]
        %v1727 = vld [vmem:[%s1725 + $0x4] sm:$0xf]
        %v1728 = vld [vmem:[%s1725 + $0x8] sm:$0xf]
        %v1729 = vld [vmem:[%s1725 + $0xc] sm:$0xf]
        %v1730 = vld [vmem:[%s1725 + $0x10] sm:$0xf]
        %v1731 = vld [vmem:[%s1725 + $0x14] sm:$0xf]
        %v1732 = vld [vmem:[%s1725 + $0x18] sm:$0xf]
        %v1733 = vld [vmem:[%s1725 + $0x1c] sm:$0xf]
        %s1734 = scalar_lea.vmem %s15, 1
        %v1735 = vld [vmem:[%s1734] sm:$0x1]
        %v1737 = vlaneseq
        %v1738 = vshrl.u32 %v1737, 7
        %v1739 = vsub.s32 0, %v1738
        %v1740 = vrot.slane %v1735, %v1739
        %v1750 = vunpack.c.l.b16 %v1726
        %v1751 = vunpack.c.l.b16 %v1727
        %v1752 = vunpack.c.l.b16 %v1728
        %v1753 = vunpack.c.l.b16 %v1729
        %v1754 = vunpack.c.l.b16 %v1730
        %v1755 = vunpack.c.l.b16 %v1731
        %v1756 = vunpack.c.l.b16 %v1732
        %v1757 = vunpack.c.l.b16 %v1733
        %v1758 = vpack.c.b16 %v1751, %v1750
        %v1759 = vpack.c.b16 %v1753, %v1752
        %v1760 = vpack.c.b16 %v1755, %v1754
        %v1761 = vpack.c.b16 %v1757, %v1756
        %v1767 = vsel %vm1174, %v1724, 0
        %1769 = vmatprep.subr.bf16.mxu0 0
        %1770 = vmatpush1.bf16.msra.mxu0 0
        %1771 = vmatprep.subr.bf16.mxu0 0
        %1772 = vmatpush1.bf16.msra.mxu0 0
        %1773 = vmatprep.subr.bf16.mxu0 0
        %1774 = vmatpush1.bf16.msra.mxu0 0
        %1775 = vmatprep.subr.bf16.mxu0 0
        %1776 = vmatpush1.bf16.msra.mxu0 0
        %1777 = vmatprep.subr.bf16.mxu0 0
        %1778 = vmatpush1.bf16.msra.mxu0 %v1761
        %1779 = vmatprep.subr.bf16.mxu0 0
        %1780 = vmatpush1.bf16.msra.mxu0 %v1760
        %1781 = vmatprep.subr.bf16.mxu0 0
        %1782 = vmatpush1.bf16.msra.mxu0 %v1759
        %1783 = vmatprep.subr.bf16.mxu0 0
        %1784 = vmatpush1.bf16.msra.mxu0 %v1758
        %1785 = vmatprep.subr.bf16.mxu0 0
        %1786 = vmatpush2.bf16.msra.mxu0 0
        %1787 = vmatprep.subr.bf16.mxu0 0
        %1788 = vmatpush2.bf16.msra.mxu0 0
        %1789 = vmatprep.subr.bf16.mxu0 0
        %1790 = vmatpush2.bf16.msra.mxu0 0
        %1791 = vmatprep.subr.bf16.mxu0 0
        %1792 = vmatpush2.bf16.msra.mxu0 0
        %1793 = vmatprep.subr.bf16.mxu0 0
        %1794 = vmatpush2.bf16.msra.mxu0 0
        %1795 = vmatprep.subr.bf16.mxu0 0
        %1796 = vmatpush2.bf16.msra.mxu0 0
        %1797 = vmatprep.subr.bf16.mxu0 0
        %1798 = vmatpush2.bf16.msra.mxu0 0
        %1799 = vmatprep.subr.bf16.mxu0 0
        %1800 = vmatpush2.bf16.msra.mxu0 0
        %1801 = vmatprep.mubr.bf16.mxu0 0
        %1802 = vmatmul.mubr.bf16.gmra.mxu0 %v1767
        %v1803 = vpop.f32.mrf.mxu0
        %v1804 = vadd.f32 %v1740, %v1803
        %v1805 = vpop.f32.mrf.mxu0
        %v1806 = vpop.f32.mrf.mxu0
        %v1807 = vpop.f32.mrf.mxu0
        %1808 = vdwg.mxu0
        %v1809 = vadd.f32 %v1645, %v1804
        %s1810 = scalar_lea.vmem %s16, 1
        %v1811 = vld [vmem:[%s1810] sm:$0x1]
        %s1812 = scalar_lea.vmem %s17, 1
        %v1813 = vld [vmem:[%s1812] sm:$0x1]
        %v1814 = vsel %vm627, %v1809, 0.0
        %1815 = vadd.xlane.f32.xlu0 %v1814
        %v1816 = vpop.xlane.xlu0 %1815
        %v1817 = vmul.f32 %v1816, %v631
        %v1818 = vsub.f32 %v1809, %v1817
        %v1819 = vmul.f32 %v1818, %v1818
        %v1820 = vsel %vm627, %v1819, 0.0
        %1821 = vadd.xlane.f32.xlu0 %v1820
        %v1822 = vpop.xlane.xlu0 %1821
        %v1823 = vmul.f32 %v1822, %v631
        %v1824 = vadd.f32 %v1823, 1e-12
        %v1825 = vrsqrt.pop %v1824
        %v1826 = vmul.f32 %v1818, %v1825
        %v1828 = vlaneseq
        %v1829 = vshrl.u32 %v1828, 7
        %v1830 = vsub.s32 0, %v1829
        %v1831 = vrot.slane %v1811, %v1830
        %v1833 = vmul.f32 %v1826, %v1831
        %v1835 = vlaneseq
        %v1836 = vshrl.u32 %v1835, 7
        %v1837 = vsub.s32 0, %v1836
        %v1838 = vrot.slane %v1813, %v1837
        %v1840 = vadd.f32 %v1833, %v1838
        %1841 = vst.msk [vmem:[%s603] sm:$0xff] %vm627, %v1840
        %s1842 = sand.u32 %s438, 1
        %s1843 = scalar_lea.sflag [#allocation3], %s1842
        %s1844 = sand.u32 %s438, 1
        %s1845 = smul.addr %s1844, 8
        %s1846 = scalar_lea.vmem [#allocation2], %s1845
        // Predicated region
        $region93: #{bert_text_encoder_forward.1} parent=91 // pred_check
          %p1847 = pneg %p448
        $region94: #{bert_text_encoder_forward.1} parent=91 // pred_check_branch
          %1849 = sbr.rel (%p1847) target = $region96
        $region95: #{bert_text_encoder_forward.1} parent=91 // pred_region
          %s1851 = ssub.s32 128, 128
          %1852 = vsyncadd %s1843, %s1851
          %s1853 = smul.addr %s32, 128
          %s1854 = scalar_lea.hbm %s18, %s1853
          %s1856 = sshll.u32 %s1846, 4
          %s1857 = int_to_ptr.vmem [resolvable:$true] %s1856
          %1859 = dma.vmem_to_hbm [thread:$0]  %s1857, 128, %s1854, %s1843
        $region96: #{bert_text_encoder_forward.1} parent=91 // pred_fallthru
          _
      $region92: #{bert_text_encoder_forward.1} parent=5 // pred_fallthru
        _
      %p1860 = scmp.le.s32.totalorder 2, %s27
      // Predicated region
      $region97: #{bert_text_encoder_forward.1} parent=5 // pred_check
        %p1861 = pneg %p1860
      $region98: #{bert_text_encoder_forward.1} parent=5 // pred_check_branch
        %1863 = sbr.rel (%p1861) target = $region100
      $region99: #{bert_text_encoder_forward.1} parent=5 // pred_region
        %s1864 = ssub.s32 %s27, 2
        // Predicated region
        $region101: #{bert_text_encoder_forward.1} parent=99 // pred_check
          %p1865 = pneg %p454
        $region102: #{bert_text_encoder_forward.1} parent=99 // pred_check_branch
          %1867 = sbr.rel (%p1865) target = $region104
        $region103: #{bert_text_encoder_forward.1} parent=99 // pred_region
          %s1868 = sand.u32 %s439, 1
          %s1869 = scalar_lea.sflag [#allocation3], %s1868
          %s1870 = sand.u32 %s439, 1
          %s1871 = smul.addr %s1870, 8
          %s1872 = scalar_lea.vmem [#allocation2], %s1871
          %1873 = dma.done %s1869, 128
        $region104: #{bert_text_encoder_forward.1} parent=99 // pred_fallthru
          _
      $region100: #{bert_text_encoder_forward.1} parent=5 // pred_fallthru
        _
    $region6: #{bert_text_encoder_forward.1} parent=1 // loop_footer
      %s31 = sadd.s32 1, %s27
    $region7: #{bert_text_encoder_forward.1} parent=1 // loop_footer_branch
      %26 = sbr.rel target = $region3
    $region8: #{bert_text_encoder_forward.1} parent=1 // loop_exit
      _
    %1874 = vsyncpa [#allocation3], 1
    %s1875 = scalar_lea.sflag [#allocation3], 1
    %1876 = vsyncpa %s1875, 1

</llo_original>
